<compile_context>
chip_gen: v5e
topology: v5e:2x2
jax: 0.10.0
libtpu: 0.0.40
codegen_flags: <defaults>
</compile_context>

<pallas_src>
import functools

import jax
import jax.numpy as jnp
from jax.experimental import pallas as pl
from jax.experimental.pallas import tpu as pltpu


def _round_up(x, m):
    return (x + m - 1) // m * m


def _pair(v):
    if isinstance(v, (tuple, list)):
        if len(v) == 1:
            return (int(v[0]), int(v[0]))
        return (int(v[0]), int(v[1]))
    return (int(v), int(v))


def _vmem_capacity_bytes():
    """Best-effort VMEM capacity query (fallback: v7x-safe 64 MiB)."""
    try:
        info = pltpu.get_tpu_info()
        cap = getattr(info, "vmem_capacity_bytes", None)
        if cap:
            return int(cap)
    except Exception:
        pass
    return 64 * 1024 * 1024


def _conv_kernel(x_ref, w_ref, b_ref, o_ref, *scratch,
                 t_oh, ow, sh, sw, kh, kw, groups, cin_g, cout_g,
                 cout, cout_gp, cout_p, k, k_pad, exact):
    """One (batch, OH-tile) per grid step.

    x_ref: (Hp, Wp, Cin)            padded NHWC image, resident per batch
    w_ref: (G, K_pad, Cout_gp)      K = KH*KW*Cin_g (zero-padded to K_pad)
    b_ref: (1, Cout_p)              f32 bias (zeros if none), fused epilogue
    o_ref: (t_oh, OW, Cout_p)       packed-channel output tile
    scratch[0] (optional): (M, K_pad) im2col LHS scratch (KH*KW > 1 only)
    """
    m = t_oh * ow
    use_scratch = (kh * kw) > 1
    lhs_ref = scratch[0] if use_scratch else None
    precision = jax.lax.Precision.HIGHEST if exact else None

    t = pl.program_id(1)
    row0 = pl.multiple_of(t * (t_oh * sh), t_oh * sh)

    # Zero the K padding lanes of the LHS scratch (VMEM may hold NaN garbage;
    # the matching weight rows are already zero).
    if use_scratch and k_pad > k:
        lhs_ref[:, k:] = jnp.zeros((m, k_pad - k), lhs_ref.dtype)

    # Zero output padding lanes that no group writes (tidy HBM contents).
    if groups > 1 and cout_p > cout:
        o_ref[:, :, cout:] = jnp.zeros((t_oh, ow, cout_p - cout), o_ref.dtype)

    def _rows_idx(ih):
        start = row0 + ih
        if sh > 1:
            return pl.ds(start, t_oh, stride=sh)   # no 2x row over-read
        return pl.ds(start, t_oh)

    def _wslice(rows, iw):
        # rows: (t_oh, Wp, cin_g) -> (t_oh, OW, cin_g), W tap + W stride.
        if sw > 1:
            return jax.lax.slice(
                rows, (0, iw, 0),
                (t_oh, iw + (ow - 1) * sw + 1, cin_g), (1, sw, 1))
        if iw == 0 and rows.shape[1] == ow:
            return rows
        return jax.lax.slice(rows, (0, iw, 0), (t_oh, iw + ow, cin_g))

    for gi in range(groups):
        ci0 = gi * cin_g
        co0 = gi * cout_g

        if use_scratch:
            # Build the (M, KH*KW*Cin_g) LHS once, then ONE matmul.
            for ih in range(kh):
                rows = x_ref[_rows_idx(ih), :, ci0:ci0 + cin_g]
                for iw in range(kw):
                    off = (ih * kw + iw) * cin_g
                    patch = _wslice(rows, iw)
                    lhs_ref[:, off:off + cin_g] = patch.reshape(m, cin_g)
            lhs = lhs_ref[...]
        else:
            # 1x1 conv: dot the (strided) patch directly, no scratch copy.
            rows = x_ref[_rows_idx(0), :, ci0:ci0 + cin_g]
            lhs = _wslice(rows, 0).reshape(m, cin_g)

        acc = jnp.dot(lhs, w_ref[gi],
                      preferred_element_type=jnp.float32,
                      precision=precision)                    # (M, Cout_gp)
        acc = acc + b_ref[0:1, co0:co0 + cout_gp]             # fused bias
        o_ref[:, :, co0:co0 + cout_gp] = (
            acc.reshape(t_oh, ow, cout_gp).astype(o_ref.dtype))


def _conv2d_pallas_call(x_nchw, w_oihw, bias_vec, stride, padding, groups,
                        compute_dtype):
    n, cin, h, w = x_nchw.shape
    cout, cin_g, kh, kw = w_oihw.shape
    assert cin == cin_g * groups and cout % groups == 0
    cout_g = cout // groups
    sh, sw = stride
    ph, pw = padding

    oh = (h + 2 * ph - kh) // sh + 1
    ow = (w + 2 * pw - kw) // sw + 1
    hp, wp = h + 2 * ph, w + 2 * pw
    out_dtype = x_nchw.dtype
    exact = jnp.dtype(compute_dtype) == jnp.dtype(jnp.float32)

    # ---- wrapper-side layout glue (XLA): NCHW->NHWC, spatial pad, cast ----
    x_nhwc = jnp.transpose(x_nchw, (0, 2, 3, 1)).astype(compute_dtype)
    x_pad = jnp.pad(x_nhwc, ((0, 0), (ph, ph), (pw, pw), (0, 0)))

    # ---- weights: (G, K_pad, N_g), K = KH*KW*Cin_g, lane-dense padding ----
    k = kh * kw * cin_g
    use_scratch = (kh * kw) > 1
    k_pad = _round_up(k, 128) if use_scratch else k
    cout_p = _round_up(cout, 128)                    # total packed out lanes
    cout_gp = cout_p if groups == 1 else cout_g      # per-group matmul N

    w2 = w_oihw.reshape(groups, cout_g, cin_g, kh, kw)
    w2 = jnp.transpose(w2, (0, 3, 4, 2, 1)).reshape(groups, k, cout_g)
    w2 = w2.astype(compute_dtype)
    if k_pad != k:
        w2 = jnp.pad(w2, ((0, 0), (0, k_pad - k), (0, 0)))
    if groups == 1 and cout_p != cout:
        w2 = jnp.pad(w2, ((0, 0), (0, 0), (0, cout_p - cout)))

    # ---- bias (fused in kernel): (1, Cout_p) f32, zeros if None ----
    if bias_vec is None:
        b2 = jnp.zeros((1, cout_p), jnp.float32)
    else:
        b2 = jnp.pad(bias_vec.astype(jnp.float32),
                     (0, cout_p - cout)).reshape(1, cout_p)

    # ---- tile / VMEM sizing from actual block bytes + chip VMEM ----
    cbytes = jnp.dtype(compute_dtype).itemsize
    obytes = jnp.dtype(out_dtype).itemsize
    vmem_cap = _vmem_capacity_bytes()
    cap_rows = 4096 if vmem_cap >= (100 << 20) else 1024   # v5e/v6e vs v7x
    budget = min(int(vmem_cap * 0.7), vmem_cap - (16 << 20))

    bytes_x = hp * wp * cin * cbytes
    bytes_w = groups * k_pad * cout_gp * cbytes
    bytes_b = cout_p * 4

    def est(d):
        mm = d * ow
        b = 2 * bytes_x + 2 * bytes_w + 2 * bytes_b
        b += 2 * mm * cout_p * obytes                       # out (double-buf)
        b += (mm * k_pad * cbytes) if use_scratch else 0    # LHS scratch
        b += mm * cout_gp * 4 + mm * k_pad * cbytes         # temporaries
        return b

    cands = [d for d in range(1, oh + 1)
             if oh % d == 0 and d * ow <= cap_rows and est(d) <= budget]
    if not cands:
        cands = [1]
    aligned = [d for d in cands if (d * ow) % 8 == 0]
    t_oh = max(aligned) if aligned else max(cands)
    n_t = oh // t_oh
    m = t_oh * ow

    vmem_limit = int(min(max(est(t_oh) * 1.3 + (8 << 20), 32 << 20),
                         min(vmem_cap - (16 << 20), 100 << 20)))

    kernel = functools.partial(
        _conv_kernel, t_oh=t_oh, ow=ow, sh=sh, sw=sw, kh=kh, kw=kw,
        groups=groups, cin_g=cin_g, cout_g=cout_g, cout=cout,
        cout_gp=cout_gp, cout_p=cout_p, k=k, k_pad=k_pad, exact=exact)

    scratch_shapes = []
    if use_scratch:
        scratch_shapes.append(pltpu.VMEM((m, k_pad), compute_dtype))

    out = pl.pallas_call(
        kernel,
        out_shape=jax.ShapeDtypeStruct((n, oh, ow, cout_p), out_dtype),
        grid_spec=pltpu.PrefetchScalarGridSpec(
            num_scalar_prefetch=0,
            grid=(n, n_t),
            in_specs=[
                # Full padded image per batch, constant over the OH-tile axis.
                pl.BlockSpec((None, hp, wp, cin), lambda b, t: (b, 0, 0, 0)),
                # All groups' weights, resident across the whole grid.
                pl.BlockSpec((groups, k_pad, cout_gp), lambda b, t: (0, 0, 0)),
                # Bias, resident across the whole grid.
                pl.BlockSpec((1, cout_p), lambda b, t: (0, 0)),
            ],
            out_specs=pl.BlockSpec((None, t_oh, ow, cout_p),
                                   lambda b, t: (b, t, 0, 0)),
            scratch_shapes=scratch_shapes,
        ),
        compiler_params=pltpu.CompilerParams(
            dimension_semantics=("parallel", "parallel"),
            vmem_limit_bytes=vmem_limit,
        ),
    )(x_pad, w2, b2)

    out = out[..., :cout]                        # drop Cout padding
    return jnp.transpose(out, (0, 3, 1, 2))      # NHWC -> NCHW


def conv2d_pallas(x, weight, bias=None, stride=(1, 1), padding=(0, 0),
                  dilation=(1, 1), transposed=False, output_padding=(0, 0),
                  groups=1, compute_dtype=jnp.bfloat16):
    """aten.convolution.default (forward) for 2-D, dilation=1.

    compute_dtype=bfloat16 uses bf16 MXU operands with f32 accumulation;
    pass compute_dtype=jnp.float32 for exact (HIGHEST precision) semantics.
    """
    assert not transposed, "transposed convolution not implemented"
    assert _pair(dilation) == (1, 1), "dilation != 1 not implemented"
    return _conv2d_pallas_call(x, weight, bias, _pair(stride), _pair(padding),
                               int(groups), compute_dtype)


if __name__ == "__main__":
    key = jax.random.PRNGKey(0)
    kx, kw_, kb, kx2, kw2, kx3, kw3, kb3 = jax.random.split(key, 8)

    # --- Case 1: dense 3x3, stride 1, pad 1, with bias ---------------------
    N, CIN, H, W = 2, 4, 16, 16
    COUT, KH, KW = 8, 3, 3
    x = jax.random.normal(kx, (N, CIN, H, W), dtype=jnp.float32)
    wgt = jax.random.normal(kw_, (COUT, CIN, KH, KW), dtype=jnp.float32) * 0.1
    b = jax.random.normal(kb, (COUT,), dtype=jnp.float32) * 0.1

    ref = jax.lax.conv_general_dilated(
        x, wgt, window_strides=(1, 1), padding=[(1, 1), (1, 1)],
        dimension_numbers=("NCHW", "OIHW", "NCHW"),
        precision=jax.lax.Precision.HIGHEST) + b.reshape(1, -1, 1, 1)

    out = jax.block_until_ready(
        conv2d_pallas(x, wgt, b, stride=(1, 1), padding=(1, 1)))
    assert out.shape == ref.shape
    assert jnp.allclose(out, ref, atol=5e-2, rtol=5e-2), "bf16 3x3 mismatch"

    out32 = jax.block_until_ready(
        conv2d_pallas(x, wgt, b, stride=(1, 1), padding=(1, 1),
                      compute_dtype=jnp.float32))
    assert jnp.allclose(out32, ref, atol=2e-3, rtol=2e-3), "f32 3x3 mismatch"

    # --- Case 2: grouped 3x3, stride 2 (RegNet-Y grouped downsample) -------
    xg = jax.random.normal(kx2, (2, 8, 9, 9), dtype=jnp.float32)
    wgg = jax.random.normal(kw2, (8, 4, 3, 3), dtype=jnp.float32) * 0.1
    refg = jax.lax.conv_general_dilated(
        xg, wgg, window_strides=(2, 2), padding=[(1, 1), (1, 1)],
        dimension_numbers=("NCHW", "OIHW", "NCHW"), feature_group_count=2,
        precision=jax.lax.Precision.HIGHEST)
    outg = jax.block_until_ready(
        conv2d_pallas(xg, wgg, None, stride=(2, 2), padding=(1, 1), groups=2))
    assert outg.shape == refg.shape
    assert jnp.allclose(outg, refg, atol=5e-2, rtol=5e-2), "grouped mismatch"

    # --- Case 3: 1x1, stride 2, with bias (RegNet-Y shortcut conv) ---------
    x1 = jax.random.normal(kx3, (2, 8, 7, 7), dtype=jnp.float32)
    w1 = jax.random.normal(kw3, (16, 8, 1, 1), dtype=jnp.float32) * 0.1
    b1 = jax.random.normal(kb3, (16,), dtype=jnp.float32) * 0.1
    ref1 = jax.lax.conv_general_dilated(
        x1, w1, window_strides=(2, 2), padding=[(0, 0), (0, 0)],
        dimension_numbers=("NCHW", "OIHW", "NCHW"),
        precision=jax.lax.Precision.HIGHEST) + b1.reshape(1, -1, 1, 1)
    out1 = jax.block_until_ready(
        conv2d_pallas(x1, w1, b1, stride=(2, 2), padding=(0, 0)))
    assert out1.shape == ref1.shape
    assert jnp.allclose(out1, ref1, atol=5e-2, rtol=5e-2), "1x1 mismatch"

    print("KERNEL_OK")
</pallas_src>

<mosaic_0001>
module attributes {stable_mosaic.version = 11 : i64} {
  func.func @_conv_kernel(%arg0: i32, %arg1: i32, %arg2: memref<1x18x18x4xbf16, #tpu.memory_space<vmem>>, %arg3: memref<1x128x128xbf16, #tpu.memory_space<vmem>>, %arg4: memref<1x128xf32, #tpu.memory_space<vmem>>, %arg5: memref<1x16x16x128xf32, #tpu.memory_space<vmem>>, %arg6: memref<256x128xbf16, #tpu.memory_space<vmem>>) attributes {dimension_semantics = [#tpu.dimension_semantics<parallel>, #tpu.dimension_semantics<parallel>], iteration_bounds = array<i64: 2, 1>, scalar_prefetch = 0 : i64, scratch_operands = 1 : i64, tpu.core_type = #tpu.core_type<tc>, window_params = [{transform_indices = @transform_0, window_bounds = array<i64: 1, 18, 18, 4>}, {pipeline_mode = #tpu.pipeline_mode<synchronous>, transform_indices = @transform_1, window_bounds = array<i64: 1, 128, 128>}, {pipeline_mode = #tpu.pipeline_mode<synchronous>, transform_indices = @transform_2, window_bounds = array<i64: 1, 128>}, {transform_indices = @transform_3, window_bounds = array<i64: 1, 16, 16, 128>}]} {
    %c16_i32 = arith.constant 16 : i32
    %0 = arith.muli %arg1, %c16_i32 : i32
    %1 = tpu.assume_multiple %0, 16 : i32
    %cst = arith.constant 0.000000e+00 : bf16
    %2 = vector.broadcast %cst : bf16 to vector<256x92xbf16>
    %c0 = arith.constant 0 : index
    %c36 = arith.constant 36 : index
    %3 = vector.load %arg6[%c0, %c36] : memref<256x128xbf16, #tpu.memory_space<vmem>>, vector<256x92xbf16>
    tpu.vector_store %arg6[%c0, %c36], %2 {strides = array<i32>} : memref<256x128xbf16, #tpu.memory_space<vmem>>, vector<256x92xbf16>,
    %c0_i32 = arith.constant 0 : i32
    %4 = arith.addi %1, %c0_i32 : i32
    %c0_0 = arith.constant 0 : index
    %5 = arith.index_cast %4 : i32 to index
    %c0_1 = arith.constant 0 : index
    %c0_2 = arith.constant 0 : index
    %6 = vector.load %arg2[%c0_0, %5, %c0_1, %c0_2] : memref<1x18x18x4xbf16, #tpu.memory_space<vmem>>, vector<1x16x18x4xbf16>
    %7 = vector.shape_cast %6 : vector<1x16x18x4xbf16> to vector<16x18x4xbf16>
    %8 = vector.extract_strided_slice %7 {offsets = [0, 0, 0], sizes = [16, 16, 4], strides = [1, 1, 1]} : vector<16x18x4xbf16> to vector<16x16x4xbf16>
    %9 = vector.shape_cast %8 : vector<16x16x4xbf16> to vector<256x4xbf16>
    %c0_3 = arith.constant 0 : index
    %c0_4 = arith.constant 0 : index
    %10 = vector.load %arg6[%c0_3, %c0_4] : memref<256x128xbf16, #tpu.memory_space<vmem>>, vector<256x4xbf16>
    tpu.vector_store %arg6[%c0_3, %c0_4], %9 {strides = array<i32>} : memref<256x128xbf16, #tpu.memory_space<vmem>>, vector<256x4xbf16>,
    %11 = vector.extract_strided_slice %7 {offsets = [0, 1, 0], sizes = [16, 16, 4], strides = [1, 1, 1]} : vector<16x18x4xbf16> to vector<16x16x4xbf16>
    %12 = vector.shape_cast %11 : vector<16x16x4xbf16> to vector<256x4xbf16>
    %c0_5 = arith.constant 0 : index
    %c4 = arith.constant 4 : index
    %13 = vector.load %arg6[%c0_5, %c4] : memref<256x128xbf16, #tpu.memory_space<vmem>>, vector<256x4xbf16>
    tpu.vector_store %arg6[%c0_5, %c4], %12 {strides = array<i32>} : memref<256x128xbf16, #tpu.memory_space<vmem>>, vector<256x4xbf16>,
    %14 = vector.extract_strided_slice %7 {offsets = [0, 2, 0], sizes = [16, 16, 4], strides = [1, 1, 1]} : vector<16x18x4xbf16> to vector<16x16x4xbf16>
    %15 = vector.shape_cast %14 : vector<16x16x4xbf16> to vector<256x4xbf16>
    %c0_6 = arith.constant 0 : index
    %c8 = arith.constant 8 : index
    %16 = vector.load %arg6[%c0_6, %c8] : memref<256x128xbf16, #tpu.memory_space<vmem>>, vector<256x4xbf16>
    tpu.vector_store %arg6[%c0_6, %c8], %15 {strides = array<i32>} : memref<256x128xbf16, #tpu.memory_space<vmem>>, vector<256x4xbf16>,
    %c1_i32 = arith.constant 1 : i32
    %17 = arith.addi %1, %c1_i32 : i32
    %c0_7 = arith.constant 0 : index
    %18 = arith.index_cast %17 : i32 to index
    %c0_8 = arith.constant 0 : index
    %c0_9 = arith.constant 0 : index
    %19 = vector.load %arg2[%c0_7, %18, %c0_8, %c0_9] : memref<1x18x18x4xbf16, #tpu.memory_space<vmem>>, vector<1x16x18x4xbf16>
    %20 = vector.shape_cast %19 : vector<1x16x18x4xbf16> to vector<16x18x4xbf16>
    %21 = vector.extract_strided_slice %20 {offsets = [0, 0, 0], sizes = [16, 16, 4], strides = [1, 1, 1]} : vector<16x18x4xbf16> to vector<16x16x4xbf16>
    %22 = vector.shape_cast %21 : vector<16x16x4xbf16> to vector<256x4xbf16>
    %c0_10 = arith.constant 0 : index
    %c12 = arith.constant 12 : index
    %23 = vector.load %arg6[%c0_10, %c12] : memref<256x128xbf16, #tpu.memory_space<vmem>>, vector<256x4xbf16>
    tpu.vector_store %arg6[%c0_10, %c12], %22 {strides = array<i32>} : memref<256x128xbf16, #tpu.memory_space<vmem>>, vector<256x4xbf16>,
    %24 = vector.extract_strided_slice %20 {offsets = [0, 1, 0], sizes = [16, 16, 4], strides = [1, 1, 1]} : vector<16x18x4xbf16> to vector<16x16x4xbf16>
    %25 = vector.shape_cast %24 : vector<16x16x4xbf16> to vector<256x4xbf16>
    %c0_11 = arith.constant 0 : index
    %c16 = arith.constant 16 : index
    %26 = vector.load %arg6[%c0_11, %c16] : memref<256x128xbf16, #tpu.memory_space<vmem>>, vector<256x4xbf16>
    tpu.vector_store %arg6[%c0_11, %c16], %25 {strides = array<i32>} : memref<256x128xbf16, #tpu.memory_space<vmem>>, vector<256x4xbf16>,
    %27 = vector.extract_strided_slice %20 {offsets = [0, 2, 0], sizes = [16, 16, 4], strides = [1, 1, 1]} : vector<16x18x4xbf16> to vector<16x16x4xbf16>
    %28 = vector.shape_cast %27 : vector<16x16x4xbf16> to vector<256x4xbf16>
    %c0_12 = arith.constant 0 : index
    %c20 = arith.constant 20 : index
    %29 = vector.load %arg6[%c0_12, %c20] : memref<256x128xbf16, #tpu.memory_space<vmem>>, vector<256x4xbf16>
    tpu.vector_store %arg6[%c0_12, %c20], %28 {strides = array<i32>} : memref<256x128xbf16, #tpu.memory_space<vmem>>, vector<256x4xbf16>,
    %c2_i32 = arith.constant 2 : i32
    %30 = arith.addi %1, %c2_i32 : i32
    %c0_13 = arith.constant 0 : index
    %31 = arith.index_cast %30 : i32 to index
    %c0_14 = arith.constant 0 : index
    %c0_15 = arith.constant 0 : index
    %32 = vector.load %arg2[%c0_13, %31, %c0_14, %c0_15] : memref<1x18x18x4xbf16, #tpu.memory_space<vmem>>, vector<1x16x18x4xbf16>
    %33 = vector.shape_cast %32 : vector<1x16x18x4xbf16> to vector<16x18x4xbf16>
    %34 = vector.extract_strided_slice %33 {offsets = [0, 0, 0], sizes = [16, 16, 4], strides = [1, 1, 1]} : vector<16x18x4xbf16> to vector<16x16x4xbf16>
    %35 = vector.shape_cast %34 : vector<16x16x4xbf16> to vector<256x4xbf16>
    %c0_16 = arith.constant 0 : index
    %c24 = arith.constant 24 : index
    %36 = vector.load %arg6[%c0_16, %c24] : memref<256x128xbf16, #tpu.memory_space<vmem>>, vector<256x4xbf16>
    tpu.vector_store %arg6[%c0_16, %c24], %35 {strides = array<i32>} : memref<256x128xbf16, #tpu.memory_space<vmem>>, vector<256x4xbf16>,
    %37 = vector.extract_strided_slice %33 {offsets = [0, 1, 0], sizes = [16, 16, 4], strides = [1, 1, 1]} : vector<16x18x4xbf16> to vector<16x16x4xbf16>
    %38 = vector.shape_cast %37 : vector<16x16x4xbf16> to vector<256x4xbf16>
    %c0_17 = arith.constant 0 : index
    %c28 = arith.constant 28 : index
    %39 = vector.load %arg6[%c0_17, %c28] : memref<256x128xbf16, #tpu.memory_space<vmem>>, vector<256x4xbf16>
    tpu.vector_store %arg6[%c0_17, %c28], %38 {strides = array<i32>} : memref<256x128xbf16, #tpu.memory_space<vmem>>, vector<256x4xbf16>,
    %40 = vector.extract_strided_slice %33 {offsets = [0, 2, 0], sizes = [16, 16, 4], strides = [1, 1, 1]} : vector<16x18x4xbf16> to vector<16x16x4xbf16>
    %41 = vector.shape_cast %40 : vector<16x16x4xbf16> to vector<256x4xbf16>
    %c0_18 = arith.constant 0 : index
    %c32 = arith.constant 32 : index
    %42 = vector.load %arg6[%c0_18, %c32] : memref<256x128xbf16, #tpu.memory_space<vmem>>, vector<256x4xbf16>
    tpu.vector_store %arg6[%c0_18, %c32], %41 {strides = array<i32>} : memref<256x128xbf16, #tpu.memory_space<vmem>>, vector<256x4xbf16>,
    %c0_19 = arith.constant 0 : index
    %c0_20 = arith.constant 0 : index
    %43 = vector.load %arg6[%c0_19, %c0_20] : memref<256x128xbf16, #tpu.memory_space<vmem>>, vector<256x128xbf16>
    %c0_21 = arith.constant 0 : index
    %c0_22 = arith.constant 0 : index
    %c0_23 = arith.constant 0 : index
    %44 = vector.load %arg3[%c0_21, %c0_22, %c0_23] : memref<1x128x128xbf16, #tpu.memory_space<vmem>>, vector<1x128x128xbf16>
    %45 = vector.shape_cast %44 : vector<1x128x128xbf16> to vector<128x128xbf16>
    %cst_24 = arith.constant dense<0.000000e+00> : vector<256x128xf32>
    %46 = tpu.matmul %43, %45, %cst_24 {dimension_numbers = #tpu.dot_dimension_numbers<[1], [0], [0], [1], [0, 0, 1, 1], [], []>} : vector<256x128xbf16>, vector<128x128xbf16>, vector<256x128xf32> -> vector<256x128xf32>
    %c0_25 = arith.constant 0 : index
    %c0_26 = arith.constant 0 : index
    %47 = vector.load %arg4[%c0_25, %c0_26] : memref<1x128xf32, #tpu.memory_space<vmem>>, vector<1x128xf32>
    %48 = vector.broadcast %47 : vector<1x128xf32> to vector<256x128xf32>
    %49 = arith.addf %46, %48 : vector<256x128xf32>
    %50 = vector.shape_cast %49 : vector<256x128xf32> to vector<16x16x128xf32>
    %c0_27 = arith.constant 0 : index
    %c0_28 = arith.constant 0 : index
    %c0_29 = arith.constant 0 : index
    %c0_30 = arith.constant 0 : index
    %51 = vector.load %arg5[%c0_27, %c0_28, %c0_29, %c0_30] : memref<1x16x16x128xf32, #tpu.memory_space<vmem>>, vector<1x16x16x128xf32>
    %52 = vector.shape_cast %51 : vector<1x16x16x128xf32> to vector<16x16x128xf32>
    %53 = vector.shape_cast %50 : vector<16x16x128xf32> to vector<1x16x16x128xf32>
    tpu.vector_store %arg5[%c0_27, %c0_28, %c0_29, %c0_30], %53 {strides = array<i32>} : memref<1x16x16x128xf32, #tpu.memory_space<vmem>>, vector<1x16x16x128xf32>,
    return
  }
  func.func @transform_0(%arg0: i32, %arg1: i32) -> (i32, i32, i32, i32) {
    %c0_i32 = arith.constant 0 : i32
    %c0_i32_0 = arith.constant 0 : i32
    %c0_i32_1 = arith.constant 0 : i32
    %c0_i32_2 = arith.constant 0 : i32
    return %arg0, %c0_i32, %c0_i32_0, %c0_i32_1 : i32, i32, i32, i32
  }
  func.func @transform_1(%arg0: i32, %arg1: i32) -> (i32, i32, i32) {
    %c0_i32 = arith.constant 0 : i32
    %c0_i32_0 = arith.constant 0 : i32
    %c0_i32_1 = arith.constant 0 : i32
    %c0_i32_2 = arith.constant 0 : i32
    return %c0_i32, %c0_i32_0, %c0_i32_1 : i32, i32, i32
  }
  func.func @transform_2(%arg0: i32, %arg1: i32) -> (i32, i32) {
    %c0_i32 = arith.constant 0 : i32
    %c0_i32_0 = arith.constant 0 : i32
    %c0_i32_1 = arith.constant 0 : i32
    return %c0_i32, %c0_i32_0 : i32, i32
  }
  func.func @transform_3(%arg0: i32, %arg1: i32) -> (i32, i32, i32, i32) {
    %c0_i32 = arith.constant 0 : i32
    %c0_i32_0 = arith.constant 0 : i32
    %c0_i32_1 = arith.constant 0 : i32
    return %arg0, %arg1, %c0_i32, %c0_i32_0 : i32, i32, i32, i32
  }
}

</mosaic_0001>

<llo_original>
// kernel: tpu_custom_call.1
$region0: #{tpu_custom_call.1}
  #allocation0 [shape = 'u32[]', space=smem, size = 0x4, offset = 0x4, fixed_abs, tag = 'smem constant byte address 0x4 - core index']
  #allocation1 [shape = 'u32[72,128]{1,0:T(1,128)}', space=vmem, size = 0x9000, scoped, tag = 'internal scratch']
  #allocation2 [shape = 'bf16[256,128]{1,0:T(8,128)(2,1)}', space=vmem, size = 0x10000, scoped, tag = 'scratch operand']
  %s0 = inlined_call_operand.vmem [shape: bf16[2,18,18,4], index: 0, kind: input, shape index: {}]
  %s1 = inlined_call_operand.vmem [shape: bf16[1,128,128], index: 1, kind: input, shape index: {}]
  %s2 = inlined_call_operand.vmem [shape: f32[1,128], index: 2, kind: input, shape index: {}]
  %s3 = inlined_call_operand.hbm [shape: f32[2,16,16,128], index: 3, kind: output, shape index: {}]
  %s4 = sld [smem:[#allocation0]]
  $region45: #{tpu_custom_call.1} parent=0
    _
  %s6 = ssub.s32 1, %s4
  %s7 = scalar_select 0, %s6, %s4
  $region1: #{tpu_custom_call.1} parent=0
    #allocation3 [shape = 'u8[262144]{0}', space=vmem, size = 0x40000, scoped, tag = 'output window, operand 0']
    #allocation4 [shape = 's32[2]{0}', space=sflag, size = 0x8, scoped, tag = 'scoped memory for tpu_custom_call.1']
    %8 = vsyncpa [#allocation4], 0
    %s9 = scalar_lea.sflag [#allocation4], 1
    %10 = vsyncpa %s9, 0
    loop: start=0, step=1, limit=4
    $region2: #{tpu_custom_call.1} parent=1 // loop_pre_header
      _
    $region3: #{tpu_custom_call.1} parent=1 // loop_header
      %s12 = sphi 0, %s16
      %p13 = scmp.ge.s32.totalorder %s12, 4
      %s19 = sphi 0, %s31
      %s20 = sphi 0, %s27
      %s21 = sphi 0, %s19
      %s22 = sphi 0, %s20
      %s23 = sphi 0, %s21
      %s24 = sphi 0, %s22
      %s34 = sphi 0, %s36
      %s37 = sphi 0, %s34
      %s38 = sphi 0, %s37
      %s54 = sphi 0, %s38
      %s58 = sphi 0, %s58
      %s60 = sphi 0, %s58
      %s61 = sphi 0, %s60
      %s75 = sphi 0, %s61
      %s79 = sphi 0, %s79
      %s81 = sphi 0, %s79
      %s82 = sphi 0, %s81
      %s96 = sphi 0, %s82
      %s104 = sphi 0, %s106
      %s107 = sphi 0, %s104
      %s108 = sphi 0, %s107
      %s124 = sphi 0, %s108
    $region4: #{tpu_custom_call.1} parent=1 // loop_header_branch
      %15 = sbr.rel (%p13) target = $region8
    $region5: #{tpu_custom_call.1} parent=1 // loop_body
      %s17 = ssub.s32 %s12, 1
      %s18 = ssub.s32 %s12, 2
      %s25 = sadd.s32 1, %s20
      %p26 = scmp.ge.s32.totalorder %s25, 1
      %s27 = scalar_select %p26, 0, %s25
      %s28 = sadd.s32 1, %s19
      %s29 = scalar_select %p26, %s28, %s19
      %p30 = scmp.ge.s32.totalorder %s29, 2
      %s31 = scalar_select %p30, 0, %s29
      %s32 = ssub.s32 %s19, %s31
      %p33 = scmp.eq.s32.totalorder %s32, 0
      %s35 = sadd.s32 %s34, 1
      %s36 = scalar_select %p33, %s34, %s35
      %p39 = pneg %p33
      %p40 = scmp.eq.s32.totalorder %s12, 1
      %p41 = por %p39, %p40
      %p42 = scmp.ne.s32.totalorder %s34, %s37
      %p43 = scmp.eq.s32.totalorder %s12, 0
      %p44 = por %p42, %p43
      %p45 = scmp.ne.s32.totalorder %s34, %s37
      %p46 = scmp.eq.s32.totalorder %s17, 1
      %p47 = por %p45, %p46
      %p48 = scmp.ne.s32.totalorder %s37, %s38
      %p49 = scmp.eq.s32.totalorder %s17, 0
      %p50 = por %p48, %p49
      %p51 = scmp.ne.s32.totalorder %s37, %s38
      %p52 = scmp.eq.s32.totalorder %s18, 1
      %p53 = por %p51, %p52
      %p55 = scmp.ne.s32.totalorder %s38, %s54
      %p56 = scmp.eq.s32.totalorder %s18, 0
      %p57 = por %p55, %p56
      %s59 = sadd.s32 %s58, 1
      %p62 = scmp.eq.s32.totalorder %s12, 1
      %p63 = scmp.ne.s32.totalorder %s58, %s60
      %p64 = scmp.eq.s32.totalorder %s12, 0
      %p65 = por %p63, %p64
      %p66 = scmp.ne.s32.totalorder %s58, %s60
      %p67 = scmp.eq.s32.totalorder %s17, 1
      %p68 = por %p66, %p67
      %p69 = scmp.ne.s32.totalorder %s60, %s61
      %p70 = scmp.eq.s32.totalorder %s17, 0
      %p71 = por %p69, %p70
      %p72 = scmp.ne.s32.totalorder %s60, %s61
      %p73 = scmp.eq.s32.totalorder %s18, 1
      %p74 = por %p72, %p73
      %p76 = scmp.ne.s32.totalorder %s61, %s75
      %p77 = scmp.eq.s32.totalorder %s18, 0
      %p78 = por %p76, %p77
      %s80 = sadd.s32 %s79, 1
      %p83 = scmp.eq.s32.totalorder %s12, 1
      %p84 = scmp.ne.s32.totalorder %s79, %s81
      %p85 = scmp.eq.s32.totalorder %s12, 0
      %p86 = por %p84, %p85
      %p87 = scmp.ne.s32.totalorder %s79, %s81
      %p88 = scmp.eq.s32.totalorder %s17, 1
      %p89 = por %p87, %p88
      %p90 = scmp.ne.s32.totalorder %s81, %s82
      %p91 = scmp.eq.s32.totalorder %s17, 0
      %p92 = por %p90, %p91
      %p93 = scmp.ne.s32.totalorder %s81, %s82
      %p94 = scmp.eq.s32.totalorder %s18, 1
      %p95 = por %p93, %p94
      %p97 = scmp.ne.s32.totalorder %s82, %s96
      %p98 = scmp.eq.s32.totalorder %s18, 0
      %p99 = por %p97, %p98
      %s100 = ssub.s32 %s19, %s31
      %s101 = ssub.s32 %s20, %s27
      %s102 = sor.u32 %s100, %s101
      %p103 = scmp.eq.s32.totalorder %s102, 0
      %s105 = sadd.s32 %s104, 1
      %s106 = scalar_select %p103, %s104, %s105
      %p109 = pneg %p103
      %p110 = scmp.eq.s32.totalorder %s12, 1
      %p111 = por %p109, %p110
      %p112 = scmp.ne.s32.totalorder %s104, %s107
      %p113 = scmp.eq.s32.totalorder %s12, 0
      %p114 = por %p112, %p113
      %p115 = scmp.ne.s32.totalorder %s104, %s107
      %p116 = scmp.eq.s32.totalorder %s17, 1
      %p117 = por %p115, %p116
      %p118 = scmp.ne.s32.totalorder %s107, %s108
      %p119 = scmp.eq.s32.totalorder %s17, 0
      %p120 = por %p118, %p119
      %p121 = scmp.ne.s32.totalorder %s107, %s108
      %p122 = scmp.eq.s32.totalorder %s18, 1
      %p123 = por %p121, %p122
      %p125 = scmp.ne.s32.totalorder %s108, %s124
      %p126 = scmp.eq.s32.totalorder %s18, 0
      %p127 = por %p125, %p126
      %p128 = scmp.le.s32.totalorder 1, %s12
      %p129 = scmp.lt.s32.totalorder %s12, 3
      %p130 = pnand %p128, %p129
      %p131 = pneg %p130
      // Predicated region
      $region9: #{tpu_custom_call.1} parent=5 // pred_check
        _
      $region10: #{tpu_custom_call.1} parent=5 // pred_check_branch
        %133 = sbr.rel (%p130) target = $region12
      $region11: #{tpu_custom_call.1} parent=5 // pred_region
        %s134 = ssub.s32 %s12, 1
        // Predicated region
        $region13: #{tpu_custom_call.1} parent=11 // pred_check
          %p135 = pneg %p71
        $region14: #{tpu_custom_call.1} parent=11 // pred_check_branch
          %137 = sbr.rel (%p135) target = $region16
        $region15: #{tpu_custom_call.1} parent=11 // pred_region
          _
        $region16: #{tpu_custom_call.1} parent=11 // pred_fallthru
          _
        // Predicated region
        $region17: #{tpu_custom_call.1} parent=11 // pred_check
          %p138 = pneg %p92
        $region18: #{tpu_custom_call.1} parent=11 // pred_check_branch
          %140 = sbr.rel (%p138) target = $region20
        $region19: #{tpu_custom_call.1} parent=11 // pred_region
          _
        $region20: #{tpu_custom_call.1} parent=11 // pred_fallthru
          _
      $region12: #{tpu_custom_call.1} parent=5 // pred_fallthru
        _
      %p141 = scmp.lt.s32.totalorder %s12, 2
      // Predicated region
      $region21: #{tpu_custom_call.1} parent=5 // pred_check
        %p142 = pneg %p141
      $region22: #{tpu_custom_call.1} parent=5 // pred_check_branch
        %144 = sbr.rel (%p142) target = $region24
      $region23: #{tpu_custom_call.1} parent=5 // pred_region
        // Predicated region
        $region25: #{tpu_custom_call.1} parent=23 // pred_check
          %p145 = pneg %p44
        $region26: #{tpu_custom_call.1} parent=23 // pred_check_branch
          %147 = sbr.rel (%p145) target = $region28
        $region27: #{tpu_custom_call.1} parent=23 // pred_region
          %p148 = scmp.lt.s32.totalorder %s19, 1
          %s149 = scalar_select %p148, %s19, 1
          %s150 = smul.addr %s149, 54
          %s151 = smul.addr %s150, 4
          %s152 = scalar_lea.vmem %s0, %s151
        $region28: #{tpu_custom_call.1} parent=23 // pred_fallthru
          _
      $region24: #{tpu_custom_call.1} parent=5 // pred_fallthru
        _
      %p153 = scmp.le.s32.totalorder 1, %s12
      %p154 = scmp.lt.s32.totalorder %s12, 3
      %p155 = pnand %p153, %p154
      %p156 = pneg %p155
      // Predicated region
      $region29: #{tpu_custom_call.1} parent=5 // pred_check
        _
      $region30: #{tpu_custom_call.1} parent=5 // pred_check_branch
        %158 = sbr.rel (%p155) target = $region32
      $region31: #{tpu_custom_call.1} parent=5 // pred_region
        %s159 = ssub.s32 %s12, 1
        %p160 = scmp.lt.s32.totalorder %s21, 1
        %s161 = scalar_select %p160, %s21, 1
        %s162 = smul.addr %s161, 54
        %s163 = smul.addr %s162, 4
        %s164 = scalar_lea.vmem %s0, %s163
        %p165 = pneg %p50
        %p166 = pneg %p47
        %p167 = pneg %p71
        %p168 = pneg %p68
        %p169 = pneg %p92
        %p170 = pneg %p89
        %p171 = pneg %p120
        %p172 = pneg %p117
        %s173 = sand.u32 %s107, 1
        %s174 = scalar_lea.sflag [#allocation4], %s173
        %s175 = sand.u32 %s107, 1
        %s176 = smul.addr %s175, 256
        %s177 = scalar_lea.vmem [#allocation3], %s176
        %p178 = scmp.lt.s32.totalorder %s21, 1
        %s179 = scalar_select %p178, %s21, 1
        %s180 = smul.addr %s179, 54
        %s181 = smul.addr %s180, 4
        %s182 = scalar_lea.vmem %s0, %s181
        %s183 = smul.u32 16, %s22
        %s185 = smul.u32 %s22, 16
        %vm186 = vcmask 1043744
        %187 = vst.msk [vmem:[#allocation2] sm:$0xf] %vm186, 0
        %188 = vst.msk [vmem:[#allocation2 + $0x4] sm:$0xf] %vm186, 0
        %189 = vst.msk [vmem:[#allocation2 + $0x8] sm:$0xf] %vm186, 0
        %190 = vst.msk [vmem:[#allocation2 + $0xc] sm:$0xf] %vm186, 0
        %191 = vst.msk [vmem:[#allocation2 + $0x10] sm:$0xf] %vm186, 0
        %192 = vst.msk [vmem:[#allocation2 + $0x14] sm:$0xf] %vm186, 0
        %193 = vst.msk [vmem:[#allocation2 + $0x18] sm:$0xf] %vm186, 0
        %194 = vst.msk [vmem:[#allocation2 + $0x1c] sm:$0xf] %vm186, 0
        %195 = vst.msk [vmem:[#allocation2 + $0x20] sm:$0xf] %vm186, 0
        %196 = vst.msk [vmem:[#allocation2 + $0x24] sm:$0xf] %vm186, 0
        %197 = vst.msk [vmem:[#allocation2 + $0x28] sm:$0xf] %vm186, 0
        %198 = vst.msk [vmem:[#allocation2 + $0x2c] sm:$0xf] %vm186, 0
        %199 = vst.msk [vmem:[#allocation2 + $0x30] sm:$0xf] %vm186, 0
        %200 = vst.msk [vmem:[#allocation2 + $0x34] sm:$0xf] %vm186, 0
        %201 = vst.msk [vmem:[#allocation2 + $0x38] sm:$0xf] %vm186, 0
        %202 = vst.msk [vmem:[#allocation2 + $0x3c] sm:$0xf] %vm186, 0
        %203 = vst.msk [vmem:[#allocation2 + $0x40] sm:$0xf] %vm186, 0
        %204 = vst.msk [vmem:[#allocation2 + $0x44] sm:$0xf] %vm186, 0
        %205 = vst.msk [vmem:[#allocation2 + $0x48] sm:$0xf] %vm186, 0
        %206 = vst.msk [vmem:[#allocation2 + $0x4c] sm:$0xf] %vm186, 0
        %207 = vst.msk [vmem:[#allocation2 + $0x50] sm:$0xf] %vm186, 0
        %208 = vst.msk [vmem:[#allocation2 + $0x54] sm:$0xf] %vm186, 0
        %209 = vst.msk [vmem:[#allocation2 + $0x58] sm:$0xf] %vm186, 0
        %210 = vst.msk [vmem:[#allocation2 + $0x5c] sm:$0xf] %vm186, 0
        %211 = vst.msk [vmem:[#allocation2 + $0x60] sm:$0xf] %vm186, 0
        %212 = vst.msk [vmem:[#allocation2 + $0x64] sm:$0xf] %vm186, 0
        %213 = vst.msk [vmem:[#allocation2 + $0x68] sm:$0xf] %vm186, 0
        %214 = vst.msk [vmem:[#allocation2 + $0x6c] sm:$0xf] %vm186, 0
        %215 = vst.msk [vmem:[#allocation2 + $0x70] sm:$0xf] %vm186, 0
        %216 = vst.msk [vmem:[#allocation2 + $0x74] sm:$0xf] %vm186, 0
        %217 = vst.msk [vmem:[#allocation2 + $0x78] sm:$0xf] %vm186, 0
        %218 = vst.msk [vmem:[#allocation2 + $0x7c] sm:$0xf] %vm186, 0
        %s219 = smul.u32 %s185, 3
        %s220 = smul.addr %s219, 4
        %s221 = scalar_lea.vmem %s182, %s220
        %v222 = vld [vmem:[%s221] sm:$0xf]
        %v223 = vld [vmem:[%s221 + $0x4] sm:$0xf]
        %v224 = vld [vmem:[%s221 + $0x8] sm:$0x1]
        %v225 = vld [vmem:[%s221 + $0xc] sm:$0xf]
        %v226 = vld [vmem:[%s221 + $0x10] sm:$0xf]
        %v227 = vld [vmem:[%s221 + $0x14] sm:$0x1]
        %v228 = vld [vmem:[%s221 + $0x18] sm:$0xf]
        %v229 = vld [vmem:[%s221 + $0x1c] sm:$0xf]
        %v230 = vld [vmem:[%s221 + $0x20] sm:$0x1]
        %v231 = vld [vmem:[%s221 + $0x24] sm:$0xf]
        %v232 = vld [vmem:[%s221 + $0x28] sm:$0xf]
        %v233 = vld [vmem:[%s221 + $0x2c] sm:$0x1]
        %v234 = vld [vmem:[%s221 + $0x30] sm:$0xf]
        %v235 = vld [vmem:[%s221 + $0x34] sm:$0xf]
        %v236 = vld [vmem:[%s221 + $0x38] sm:$0x1]
        %v237 = vld [vmem:[%s221 + $0x3c] sm:$0xf]
        %v238 = vld [vmem:[%s221 + $0x40] sm:$0xf]
        %v239 = vld [vmem:[%s221 + $0x44] sm:$0x1]
        %v240 = vld [vmem:[%s221 + $0x48] sm:$0xf]
        %v241 = vld [vmem:[%s221 + $0x4c] sm:$0xf]
        %v242 = vld [vmem:[%s221 + $0x50] sm:$0x1]
        %v243 = vld [vmem:[%s221 + $0x54] sm:$0xf]
        %v244 = vld [vmem:[%s221 + $0x58] sm:$0xf]
        %v245 = vld [vmem:[%s221 + $0x5c] sm:$0x1]
        %v246 = vld [vmem:[%s221 + $0x60] sm:$0xf]
        %v247 = vld [vmem:[%s221 + $0x64] sm:$0xf]
        %v248 = vld [vmem:[%s221 + $0x68] sm:$0x1]
        %v249 = vld [vmem:[%s221 + $0x6c] sm:$0xf]
        %v250 = vld [vmem:[%s221 + $0x70] sm:$0xf]
        %v251 = vld [vmem:[%s221 + $0x74] sm:$0x1]
        %v252 = vld [vmem:[%s221 + $0x78] sm:$0xf]
        %v253 = vld [vmem:[%s221 + $0x7c] sm:$0xf]
        %v254 = vld [vmem:[%s221 + $0x80] sm:$0x1]
        %v255 = vld [vmem:[%s221 + $0x84] sm:$0xf]
        %v256 = vld [vmem:[%s221 + $0x88] sm:$0xf]
        %v257 = vld [vmem:[%s221 + $0x8c] sm:$0x1]
        %v258 = vld [vmem:[%s221 + $0x90] sm:$0xf]
        %v259 = vld [vmem:[%s221 + $0x94] sm:$0xf]
        %v260 = vld [vmem:[%s221 + $0x98] sm:$0x1]
        %v261 = vld [vmem:[%s221 + $0x9c] sm:$0xf]
        %v262 = vld [vmem:[%s221 + $0xa0] sm:$0xf]
        %v263 = vld [vmem:[%s221 + $0xa4] sm:$0x1]
        %v264 = vld [vmem:[%s221 + $0xa8] sm:$0xf]
        %v265 = vld [vmem:[%s221 + $0xac] sm:$0xf]
        %v266 = vld [vmem:[%s221 + $0xb0] sm:$0x1]
        %v267 = vld [vmem:[%s221 + $0xb4] sm:$0xf]
        %v268 = vld [vmem:[%s221 + $0xb8] sm:$0xf]
        %v269 = vld [vmem:[%s221 + $0xbc] sm:$0x1]
        %vm270 = vcmask 27648
        %271 = vst.msk [vmem:[#allocation2] sm:$0xf] %vm270, %v222
        %272 = vst.msk [vmem:[#allocation2 + $0x4] sm:$0xf] %vm270, %v223
        %273 = vst.msk [vmem:[#allocation2 + $0x8] sm:$0xf] %vm270, %v225
        %274 = vst.msk [vmem:[#allocation2 + $0xc] sm:$0xf] %vm270, %v226
        %275 = vst.msk [vmem:[#allocation2 + $0x10] sm:$0xf] %vm270, %v228
        %276 = vst.msk [vmem:[#allocation2 + $0x14] sm:$0xf] %vm270, %v229
        %277 = vst.msk [vmem:[#allocation2 + $0x18] sm:$0xf] %vm270, %v231
        %278 = vst.msk [vmem:[#allocation2 + $0x1c] sm:$0xf] %vm270, %v232
        %279 = vst.msk [vmem:[#allocation2 + $0x20] sm:$0xf] %vm270, %v234
        %280 = vst.msk [vmem:[#allocation2 + $0x24] sm:$0xf] %vm270, %v235
        %281 = vst.msk [vmem:[#allocation2 + $0x28] sm:$0xf] %vm270, %v237
        %282 = vst.msk [vmem:[#allocation2 + $0x2c] sm:$0xf] %vm270, %v238
        %283 = vst.msk [vmem:[#allocation2 + $0x30] sm:$0xf] %vm270, %v240
        %284 = vst.msk [vmem:[#allocation2 + $0x34] sm:$0xf] %vm270, %v241
        %285 = vst.msk [vmem:[#allocation2 + $0x38] sm:$0xf] %vm270, %v243
        %286 = vst.msk [vmem:[#allocation2 + $0x3c] sm:$0xf] %vm270, %v244
        %287 = vst.msk [vmem:[#allocation2 + $0x40] sm:$0xf] %vm270, %v246
        %288 = vst.msk [vmem:[#allocation2 + $0x44] sm:$0xf] %vm270, %v247
        %289 = vst.msk [vmem:[#allocation2 + $0x48] sm:$0xf] %vm270, %v249
        %290 = vst.msk [vmem:[#allocation2 + $0x4c] sm:$0xf] %vm270, %v250
        %291 = vst.msk [vmem:[#allocation2 + $0x50] sm:$0xf] %vm270, %v252
        %292 = vst.msk [vmem:[#allocation2 + $0x54] sm:$0xf] %vm270, %v253
        %293 = vst.msk [vmem:[#allocation2 + $0x58] sm:$0xf] %vm270, %v255
        %294 = vst.msk [vmem:[#allocation2 + $0x5c] sm:$0xf] %vm270, %v256
        %295 = vst.msk [vmem:[#allocation2 + $0x60] sm:$0xf] %vm270, %v258
        %296 = vst.msk [vmem:[#allocation2 + $0x64] sm:$0xf] %vm270, %v259
        %297 = vst.msk [vmem:[#allocation2 + $0x68] sm:$0xf] %vm270, %v261
        %298 = vst.msk [vmem:[#allocation2 + $0x6c] sm:$0xf] %vm270, %v262
        %299 = vst.msk [vmem:[#allocation2 + $0x70] sm:$0xf] %vm270, %v264
        %300 = vst.msk [vmem:[#allocation2 + $0x74] sm:$0xf] %vm270, %v265
        %301 = vst.msk [vmem:[#allocation2 + $0x78] sm:$0xf] %vm270, %v267
        %302 = vst.msk [vmem:[#allocation2 + $0x7c] sm:$0xf] %vm270, %v268
        %vm303 = vsmask.f32 3328
        %vm304 = vsmask.f32 7440
        %vm305 = vmor %vm303, %vm304
        %v307 = vshrl.u32 %v222, 16
        %v309 = vrot.slane %v307, 4
        %v310 = vshll.u32 %v222, 16
        %v312 = vrot.slane %v310, 5
        %v313 = vor.u32 %v309, %v312
        %v314 = vrot.slane %v313, 4
        %v316 = vshll.u32 %v223, 16
        %v318 = vrot.slane %v316, 5
        %v319 = vsel %vm305, %v314, %v318
        %v320 = vshrl.u32 %v223, 16
        %v322 = vrot.slane %v320, 4
        %v323 = vor.u32 %v322, %v318
        %v324 = vrot.slane %v323, 4
        %v326 = vshll.u32 %v224, 16
        %v328 = vrot.slane %v326, 5
        %v329 = vsel %vm305, %v324, %v328
        %v331 = vshrl.u32 %v225, 16
        %v333 = vrot.slane %v331, 4
        %v334 = vshll.u32 %v225, 16
        %v336 = vrot.slane %v334, 5
        %v337 = vor.u32 %v333, %v336
        %v338 = vrot.slane %v337, 4
        %v340 = vshll.u32 %v226, 16
        %v342 = vrot.slane %v340, 5
        %v343 = vsel %vm305, %v338, %v342
        %v344 = vshrl.u32 %v226, 16
        %v346 = vrot.slane %v344, 4
        %v347 = vor.u32 %v346, %v342
        %v348 = vrot.slane %v347, 4
        %v350 = vshll.u32 %v227, 16
        %v352 = vrot.slane %v350, 5
        %v353 = vsel %vm305, %v348, %v352
        %v355 = vshrl.u32 %v228, 16
        %v357 = vrot.slane %v355, 4
        %v358 = vshll.u32 %v228, 16
        %v360 = vrot.slane %v358, 5
        %v361 = vor.u32 %v357, %v360
        %v362 = vrot.slane %v361, 4
        %v364 = vshll.u32 %v229, 16
        %v366 = vrot.slane %v364, 5
        %v367 = vsel %vm305, %v362, %v366
        %v368 = vshrl.u32 %v229, 16
        %v370 = vrot.slane %v368, 4
        %v371 = vor.u32 %v370, %v366
        %v372 = vrot.slane %v371, 4
        %v374 = vshll.u32 %v230, 16
        %v376 = vrot.slane %v374, 5
        %v377 = vsel %vm305, %v372, %v376
        %v379 = vshrl.u32 %v231, 16
        %v381 = vrot.slane %v379, 4
        %v382 = vshll.u32 %v231, 16
        %v384 = vrot.slane %v382, 5
        %v385 = vor.u32 %v381, %v384
        %v386 = vrot.slane %v385, 4
        %v388 = vshll.u32 %v232, 16
        %v390 = vrot.slane %v388, 5
        %v391 = vsel %vm305, %v386, %v390
        %v392 = vshrl.u32 %v232, 16
        %v394 = vrot.slane %v392, 4
        %v395 = vor.u32 %v394, %v390
        %v396 = vrot.slane %v395, 4
        %v398 = vshll.u32 %v233, 16
        %v400 = vrot.slane %v398, 5
        %v401 = vsel %vm305, %v396, %v400
        %v403 = vshrl.u32 %v234, 16
        %v405 = vrot.slane %v403, 4
        %v406 = vshll.u32 %v234, 16
        %v408 = vrot.slane %v406, 5
        %v409 = vor.u32 %v405, %v408
        %v410 = vrot.slane %v409, 4
        %v412 = vshll.u32 %v235, 16
        %v414 = vrot.slane %v412, 5
        %v415 = vsel %vm305, %v410, %v414
        %v416 = vshrl.u32 %v235, 16
        %v418 = vrot.slane %v416, 4
        %v419 = vor.u32 %v418, %v414
        %v420 = vrot.slane %v419, 4
        %v422 = vshll.u32 %v236, 16
        %v424 = vrot.slane %v422, 5
        %v425 = vsel %vm305, %v420, %v424
        %v427 = vshrl.u32 %v237, 16
        %v429 = vrot.slane %v427, 4
        %v430 = vshll.u32 %v237, 16
        %v432 = vrot.slane %v430, 5
        %v433 = vor.u32 %v429, %v432
        %v434 = vrot.slane %v433, 4
        %v436 = vshll.u32 %v238, 16
        %v438 = vrot.slane %v436, 5
        %v439 = vsel %vm305, %v434, %v438
        %v440 = vshrl.u32 %v238, 16
        %v442 = vrot.slane %v440, 4
        %v443 = vor.u32 %v442, %v438
        %v444 = vrot.slane %v443, 4
        %v446 = vshll.u32 %v239, 16
        %v448 = vrot.slane %v446, 5
        %v449 = vsel %vm305, %v444, %v448
        %v451 = vshrl.u32 %v240, 16
        %v453 = vrot.slane %v451, 4
        %v454 = vshll.u32 %v240, 16
        %v456 = vrot.slane %v454, 5
        %v457 = vor.u32 %v453, %v456
        %v458 = vrot.slane %v457, 4
        %v460 = vshll.u32 %v241, 16
        %v462 = vrot.slane %v460, 5
        %v463 = vsel %vm305, %v458, %v462
        %v464 = vshrl.u32 %v241, 16
        %v466 = vrot.slane %v464, 4
        %v467 = vor.u32 %v466, %v462
        %v468 = vrot.slane %v467, 4
        %v470 = vshll.u32 %v242, 16
        %v472 = vrot.slane %v470, 5
        %v473 = vsel %vm305, %v468, %v472
        %v475 = vshrl.u32 %v243, 16
        %v477 = vrot.slane %v475, 4
        %v478 = vshll.u32 %v243, 16
        %v480 = vrot.slane %v478, 5
        %v481 = vor.u32 %v477, %v480
        %v482 = vrot.slane %v481, 4
        %v484 = vshll.u32 %v244, 16
        %v486 = vrot.slane %v484, 5
        %v487 = vsel %vm305, %v482, %v486
        %v488 = vshrl.u32 %v244, 16
        %v490 = vrot.slane %v488, 4
        %v491 = vor.u32 %v490, %v486
        %v492 = vrot.slane %v491, 4
        %v494 = vshll.u32 %v245, 16
        %v496 = vrot.slane %v494, 5
        %v497 = vsel %vm305, %v492, %v496
        %v499 = vshrl.u32 %v246, 16
        %v501 = vrot.slane %v499, 4
        %v502 = vshll.u32 %v246, 16
        %v504 = vrot.slane %v502, 5
        %v505 = vor.u32 %v501, %v504
        %v506 = vrot.slane %v505, 4
        %v508 = vshll.u32 %v247, 16
        %v510 = vrot.slane %v508, 5
        %v511 = vsel %vm305, %v506, %v510
        %v512 = vshrl.u32 %v247, 16
        %v514 = vrot.slane %v512, 4
        %v515 = vor.u32 %v514, %v510
        %v516 = vrot.slane %v515, 4
        %v518 = vshll.u32 %v248, 16
        %v520 = vrot.slane %v518, 5
        %v521 = vsel %vm305, %v516, %v520
        %v523 = vshrl.u32 %v249, 16
        %v525 = vrot.slane %v523, 4
        %v526 = vshll.u32 %v249, 16
        %v528 = vrot.slane %v526, 5
        %v529 = vor.u32 %v525, %v528
        %v530 = vrot.slane %v529, 4
        %v532 = vshll.u32 %v250, 16
        %v534 = vrot.slane %v532, 5
        %v535 = vsel %vm305, %v530, %v534
        %v536 = vshrl.u32 %v250, 16
        %v538 = vrot.slane %v536, 4
        %v539 = vor.u32 %v538, %v534
        %v540 = vrot.slane %v539, 4
        %v542 = vshll.u32 %v251, 16
        %v544 = vrot.slane %v542, 5
        %v545 = vsel %vm305, %v540, %v544
        %v547 = vshrl.u32 %v252, 16
        %v549 = vrot.slane %v547, 4
        %v550 = vshll.u32 %v252, 16
        %v552 = vrot.slane %v550, 5
        %v553 = vor.u32 %v549, %v552
        %v554 = vrot.slane %v553, 4
        %v556 = vshll.u32 %v253, 16
        %v558 = vrot.slane %v556, 5
        %v559 = vsel %vm305, %v554, %v558
        %v560 = vshrl.u32 %v253, 16
        %v562 = vrot.slane %v560, 4
        %v563 = vor.u32 %v562, %v558
        %v564 = vrot.slane %v563, 4
        %v566 = vshll.u32 %v254, 16
        %v568 = vrot.slane %v566, 5
        %v569 = vsel %vm305, %v564, %v568
        %v571 = vshrl.u32 %v255, 16
        %v573 = vrot.slane %v571, 4
        %v574 = vshll.u32 %v255, 16
        %v576 = vrot.slane %v574, 5
        %v577 = vor.u32 %v573, %v576
        %v578 = vrot.slane %v577, 4
        %v580 = vshll.u32 %v256, 16
        %v582 = vrot.slane %v580, 5
        %v583 = vsel %vm305, %v578, %v582
        %v584 = vshrl.u32 %v256, 16
        %v586 = vrot.slane %v584, 4
        %v587 = vor.u32 %v586, %v582
        %v588 = vrot.slane %v587, 4
        %v590 = vshll.u32 %v257, 16
        %v592 = vrot.slane %v590, 5
        %v593 = vsel %vm305, %v588, %v592
        %v595 = vshrl.u32 %v258, 16
        %v597 = vrot.slane %v595, 4
        %v598 = vshll.u32 %v258, 16
        %v600 = vrot.slane %v598, 5
        %v601 = vor.u32 %v597, %v600
        %v602 = vrot.slane %v601, 4
        %v604 = vshll.u32 %v259, 16
        %v606 = vrot.slane %v604, 5
        %v607 = vsel %vm305, %v602, %v606
        %v608 = vshrl.u32 %v259, 16
        %v610 = vrot.slane %v608, 4
        %v611 = vor.u32 %v610, %v606
        %v612 = vrot.slane %v611, 4
        %v614 = vshll.u32 %v260, 16
        %v616 = vrot.slane %v614, 5
        %v617 = vsel %vm305, %v612, %v616
        %v619 = vshrl.u32 %v261, 16
        %v621 = vrot.slane %v619, 4
        %v622 = vshll.u32 %v261, 16
        %v624 = vrot.slane %v622, 5
        %v625 = vor.u32 %v621, %v624
        %v626 = vrot.slane %v625, 4
        %v628 = vshll.u32 %v262, 16
        %v630 = vrot.slane %v628, 5
        %v631 = vsel %vm305, %v626, %v630
        %v632 = vshrl.u32 %v262, 16
        %v634 = vrot.slane %v632, 4
        %v635 = vor.u32 %v634, %v630
        %v636 = vrot.slane %v635, 4
        %v638 = vshll.u32 %v263, 16
        %v640 = vrot.slane %v638, 5
        %v641 = vsel %vm305, %v636, %v640
        %v643 = vshrl.u32 %v264, 16
        %v645 = vrot.slane %v643, 4
        %v646 = vshll.u32 %v264, 16
        %v648 = vrot.slane %v646, 5
        %v649 = vor.u32 %v645, %v648
        %v650 = vrot.slane %v649, 4
        %v652 = vshll.u32 %v265, 16
        %v654 = vrot.slane %v652, 5
        %v655 = vsel %vm305, %v650, %v654
        %v656 = vshrl.u32 %v265, 16
        %v658 = vrot.slane %v656, 4
        %v659 = vor.u32 %v658, %v654
        %v660 = vrot.slane %v659, 4
        %v662 = vshll.u32 %v266, 16
        %v664 = vrot.slane %v662, 5
        %v665 = vsel %vm305, %v660, %v664
        %v667 = vshrl.u32 %v267, 16
        %v669 = vrot.slane %v667, 4
        %v670 = vshll.u32 %v267, 16
        %v672 = vrot.slane %v670, 5
        %v673 = vor.u32 %v669, %v672
        %v674 = vrot.slane %v673, 4
        %v676 = vshll.u32 %v268, 16
        %v678 = vrot.slane %v676, 5
        %v679 = vsel %vm305, %v674, %v678
        %v680 = vshrl.u32 %v268, 16
        %v682 = vrot.slane %v680, 4
        %v683 = vor.u32 %v682, %v678
        %v684 = vrot.slane %v683, 4
        %v686 = vshll.u32 %v269, 16
        %v688 = vrot.slane %v686, 5
        %v689 = vsel %vm305, %v684, %v688
        %690 = vrot.lane.b32.xlu0 %v319, 4
        %v691 = vpop.permute.xlu0 %690
        %692 = vrot.lane.b32.xlu0 %v329, 4
        %v693 = vpop.permute.xlu0 %692
        %694 = vrot.lane.b32.xlu0 %v343, 4
        %v695 = vpop.permute.xlu0 %694
        %696 = vrot.lane.b32.xlu0 %v353, 4
        %v697 = vpop.permute.xlu0 %696
        %698 = vrot.lane.b32.xlu0 %v367, 4
        %v699 = vpop.permute.xlu0 %698
        %700 = vrot.lane.b32.xlu0 %v377, 4
        %v701 = vpop.permute.xlu0 %700
        %702 = vrot.lane.b32.xlu0 %v391, 4
        %v703 = vpop.permute.xlu0 %702
        %704 = vrot.lane.b32.xlu0 %v401, 4
        %v705 = vpop.permute.xlu0 %704
        %706 = vrot.lane.b32.xlu0 %v415, 4
        %v707 = vpop.permute.xlu0 %706
        %708 = vrot.lane.b32.xlu0 %v425, 4
        %v709 = vpop.permute.xlu0 %708
        %710 = vrot.lane.b32.xlu0 %v439, 4
        %v711 = vpop.permute.xlu0 %710
        %712 = vrot.lane.b32.xlu0 %v449, 4
        %v713 = vpop.permute.xlu0 %712
        %714 = vrot.lane.b32.xlu0 %v463, 4
        %v715 = vpop.permute.xlu0 %714
        %716 = vrot.lane.b32.xlu0 %v473, 4
        %v717 = vpop.permute.xlu0 %716
        %718 = vrot.lane.b32.xlu0 %v487, 4
        %v719 = vpop.permute.xlu0 %718
        %720 = vrot.lane.b32.xlu0 %v497, 4
        %v721 = vpop.permute.xlu0 %720
        %722 = vrot.lane.b32.xlu0 %v511, 4
        %v723 = vpop.permute.xlu0 %722
        %724 = vrot.lane.b32.xlu0 %v521, 4
        %v725 = vpop.permute.xlu0 %724
        %726 = vrot.lane.b32.xlu0 %v535, 4
        %v727 = vpop.permute.xlu0 %726
        %728 = vrot.lane.b32.xlu0 %v545, 4
        %v729 = vpop.permute.xlu0 %728
        %730 = vrot.lane.b32.xlu0 %v559, 4
        %v731 = vpop.permute.xlu0 %730
        %732 = vrot.lane.b32.xlu0 %v569, 4
        %v733 = vpop.permute.xlu0 %732
        %734 = vrot.lane.b32.xlu0 %v583, 4
        %v735 = vpop.permute.xlu0 %734
        %736 = vrot.lane.b32.xlu0 %v593, 4
        %v737 = vpop.permute.xlu0 %736
        %738 = vrot.lane.b32.xlu0 %v607, 4
        %v739 = vpop.permute.xlu0 %738
        %740 = vrot.lane.b32.xlu0 %v617, 4
        %v741 = vpop.permute.xlu0 %740
        %742 = vrot.lane.b32.xlu0 %v631, 4
        %v743 = vpop.permute.xlu0 %742
        %744 = vrot.lane.b32.xlu0 %v641, 4
        %v745 = vpop.permute.xlu0 %744
        %746 = vrot.lane.b32.xlu0 %v655, 4
        %v747 = vpop.permute.xlu0 %746
        %748 = vrot.lane.b32.xlu0 %v665, 4
        %v749 = vpop.permute.xlu0 %748
        %750 = vrot.lane.b32.xlu0 %v679, 4
        %v751 = vpop.permute.xlu0 %750
        %752 = vrot.lane.b32.xlu0 %v689, 4
        %v753 = vpop.permute.xlu0 %752
        %vm786 = vcmask 60448
        %787 = vst.msk [vmem:[#allocation2] sm:$0xf] %vm786, %v691
        %788 = vst.msk [vmem:[#allocation2 + $0x4] sm:$0xf] %vm786, %v693
        %789 = vst.msk [vmem:[#allocation2 + $0x8] sm:$0xf] %vm786, %v695
        %790 = vst.msk [vmem:[#allocation2 + $0xc] sm:$0xf] %vm786, %v697
        %791 = vst.msk [vmem:[#allocation2 + $0x10] sm:$0xf] %vm786, %v699
        %792 = vst.msk [vmem:[#allocation2 + $0x14] sm:$0xf] %vm786, %v701
        %793 = vst.msk [vmem:[#allocation2 + $0x18] sm:$0xf] %vm786, %v703
        %794 = vst.msk [vmem:[#allocation2 + $0x1c] sm:$0xf] %vm786, %v705
        %795 = vst.msk [vmem:[#allocation2 + $0x20] sm:$0xf] %vm786, %v707
        %796 = vst.msk [vmem:[#allocation2 + $0x24] sm:$0xf] %vm786, %v709
        %797 = vst.msk [vmem:[#allocation2 + $0x28] sm:$0xf] %vm786, %v711
        %798 = vst.msk [vmem:[#allocation2 + $0x2c] sm:$0xf] %vm786, %v713
        %799 = vst.msk [vmem:[#allocation2 + $0x30] sm:$0xf] %vm786, %v715
        %800 = vst.msk [vmem:[#allocation2 + $0x34] sm:$0xf] %vm786, %v717
        %801 = vst.msk [vmem:[#allocation2 + $0x38] sm:$0xf] %vm786, %v719
        %802 = vst.msk [vmem:[#allocation2 + $0x3c] sm:$0xf] %vm786, %v721
        %803 = vst.msk [vmem:[#allocation2 + $0x40] sm:$0xf] %vm786, %v723
        %804 = vst.msk [vmem:[#allocation2 + $0x44] sm:$0xf] %vm786, %v725
        %805 = vst.msk [vmem:[#allocation2 + $0x48] sm:$0xf] %vm786, %v727
        %806 = vst.msk [vmem:[#allocation2 + $0x4c] sm:$0xf] %vm786, %v729
        %807 = vst.msk [vmem:[#allocation2 + $0x50] sm:$0xf] %vm786, %v731
        %808 = vst.msk [vmem:[#allocation2 + $0x54] sm:$0xf] %vm786, %v733
        %809 = vst.msk [vmem:[#allocation2 + $0x58] sm:$0xf] %vm786, %v735
        %810 = vst.msk [vmem:[#allocation2 + $0x5c] sm:$0xf] %vm786, %v737
        %811 = vst.msk [vmem:[#allocation2 + $0x60] sm:$0xf] %vm786, %v739
        %812 = vst.msk [vmem:[#allocation2 + $0x64] sm:$0xf] %vm786, %v741
        %813 = vst.msk [vmem:[#allocation2 + $0x68] sm:$0xf] %vm786, %v743
        %814 = vst.msk [vmem:[#allocation2 + $0x6c] sm:$0xf] %vm786, %v745
        %815 = vst.msk [vmem:[#allocation2 + $0x70] sm:$0xf] %vm786, %v747
        %816 = vst.msk [vmem:[#allocation2 + $0x74] sm:$0xf] %vm786, %v749
        %817 = vst.msk [vmem:[#allocation2 + $0x78] sm:$0xf] %vm786, %v751
        %818 = vst.msk [vmem:[#allocation2 + $0x7c] sm:$0xf] %vm786, %v753
        %vm867 = vcmask 1042432
        %vm868 = vcmask 1046532
        %vm869 = vmor %vm867, %vm868
        %v870 = vrot.slane %v222, 5
        %v871 = vrot.slane %v870, 4
        %v872 = vrot.slane %v223, 5
        %v873 = vsel %vm869, %v871, %v872
        %v874 = vrot.slane %v872, 4
        %v875 = vrot.slane %v224, 5
        %v876 = vsel %vm869, %v874, %v875
        %v877 = vrot.slane %v225, 5
        %v878 = vrot.slane %v877, 4
        %v879 = vrot.slane %v226, 5
        %v880 = vsel %vm869, %v878, %v879
        %v881 = vrot.slane %v879, 4
        %v882 = vrot.slane %v227, 5
        %v883 = vsel %vm869, %v881, %v882
        %v884 = vrot.slane %v228, 5
        %v885 = vrot.slane %v884, 4
        %v886 = vrot.slane %v229, 5
        %v887 = vsel %vm869, %v885, %v886
        %v888 = vrot.slane %v886, 4
        %v889 = vrot.slane %v230, 5
        %v890 = vsel %vm869, %v888, %v889
        %v891 = vrot.slane %v231, 5
        %v892 = vrot.slane %v891, 4
        %v893 = vrot.slane %v232, 5
        %v894 = vsel %vm869, %v892, %v893
        %v895 = vrot.slane %v893, 4
        %v896 = vrot.slane %v233, 5
        %v897 = vsel %vm869, %v895, %v896
        %v898 = vrot.slane %v234, 5
        %v899 = vrot.slane %v898, 4
        %v900 = vrot.slane %v235, 5
        %v901 = vsel %vm869, %v899, %v900
        %v902 = vrot.slane %v900, 4
        %v903 = vrot.slane %v236, 5
        %v904 = vsel %vm869, %v902, %v903
        %v905 = vrot.slane %v237, 5
        %v906 = vrot.slane %v905, 4
        %v907 = vrot.slane %v238, 5
        %v908 = vsel %vm869, %v906, %v907
        %v909 = vrot.slane %v907, 4
        %v910 = vrot.slane %v239, 5
        %v911 = vsel %vm869, %v909, %v910
        %v912 = vrot.slane %v240, 5
        %v913 = vrot.slane %v912, 4
        %v914 = vrot.slane %v241, 5
        %v915 = vsel %vm869, %v913, %v914
        %v916 = vrot.slane %v914, 4
        %v917 = vrot.slane %v242, 5
        %v918 = vsel %vm869, %v916, %v917
        %v919 = vrot.slane %v243, 5
        %v920 = vrot.slane %v919, 4
        %v921 = vrot.slane %v244, 5
        %v922 = vsel %vm869, %v920, %v921
        %v923 = vrot.slane %v921, 4
        %v924 = vrot.slane %v245, 5
        %v925 = vsel %vm869, %v923, %v924
        %v926 = vrot.slane %v246, 5
        %v927 = vrot.slane %v926, 4
        %v928 = vrot.slane %v247, 5
        %v929 = vsel %vm869, %v927, %v928
        %v930 = vrot.slane %v928, 4
        %v931 = vrot.slane %v248, 5
        %v932 = vsel %vm869, %v930, %v931
        %v933 = vrot.slane %v249, 5
        %v934 = vrot.slane %v933, 4
        %v935 = vrot.slane %v250, 5
        %v936 = vsel %vm869, %v934, %v935
        %v937 = vrot.slane %v935, 4
        %v938 = vrot.slane %v251, 5
        %v939 = vsel %vm869, %v937, %v938
        %v940 = vrot.slane %v252, 5
        %v941 = vrot.slane %v940, 4
        %v942 = vrot.slane %v253, 5
        %v943 = vsel %vm869, %v941, %v942
        %v944 = vrot.slane %v942, 4
        %v945 = vrot.slane %v254, 5
        %v946 = vsel %vm869, %v944, %v945
        %v947 = vrot.slane %v255, 5
        %v948 = vrot.slane %v947, 4
        %v949 = vrot.slane %v256, 5
        %v950 = vsel %vm869, %v948, %v949
        %v951 = vrot.slane %v949, 4
        %v952 = vrot.slane %v257, 5
        %v953 = vsel %vm869, %v951, %v952
        %v954 = vrot.slane %v258, 5
        %v955 = vrot.slane %v954, 4
        %v956 = vrot.slane %v259, 5
        %v957 = vsel %vm869, %v955, %v956
        %v958 = vrot.slane %v956, 4
        %v959 = vrot.slane %v260, 5
        %v960 = vsel %vm869, %v958, %v959
        %v961 = vrot.slane %v261, 5
        %v962 = vrot.slane %v961, 4
        %v963 = vrot.slane %v262, 5
        %v964 = vsel %vm869, %v962, %v963
        %v965 = vrot.slane %v963, 4
        %v966 = vrot.slane %v263, 5
        %v967 = vsel %vm869, %v965, %v966
        %v968 = vrot.slane %v264, 5
        %v969 = vrot.slane %v968, 4
        %v970 = vrot.slane %v265, 5
        %v971 = vsel %vm869, %v969, %v970
        %v972 = vrot.slane %v970, 4
        %v973 = vrot.slane %v266, 5
        %v974 = vsel %vm869, %v972, %v973
        %v975 = vrot.slane %v267, 5
        %v976 = vrot.slane %v975, 4
        %v977 = vrot.slane %v268, 5
        %v978 = vsel %vm869, %v976, %v977
        %v979 = vrot.slane %v977, 4
        %v980 = vrot.slane %v269, 5
        %v981 = vsel %vm869, %v979, %v980
        %982 = vrot.lane.b32.xlu0 %v873, 8
        %v983 = vpop.permute.xlu0 %982
        %984 = vrot.lane.b32.xlu0 %v876, 8
        %v985 = vpop.permute.xlu0 %984
        %986 = vrot.lane.b32.xlu0 %v880, 8
        %v987 = vpop.permute.xlu0 %986
        %988 = vrot.lane.b32.xlu0 %v883, 8
        %v989 = vpop.permute.xlu0 %988
        %990 = vrot.lane.b32.xlu0 %v887, 8
        %v991 = vpop.permute.xlu0 %990
        %992 = vrot.lane.b32.xlu0 %v890, 8
        %v993 = vpop.permute.xlu0 %992
        %994 = vrot.lane.b32.xlu0 %v894, 8
        %v995 = vpop.permute.xlu0 %994
        %996 = vrot.lane.b32.xlu0 %v897, 8
        %v997 = vpop.permute.xlu0 %996
        %998 = vrot.lane.b32.xlu0 %v901, 8
        %v999 = vpop.permute.xlu0 %998
        %1000 = vrot.lane.b32.xlu0 %v904, 8
        %v1001 = vpop.permute.xlu0 %1000
        %1002 = vrot.lane.b32.xlu0 %v908, 8
        %v1003 = vpop.permute.xlu0 %1002
        %1004 = vrot.lane.b32.xlu0 %v911, 8
        %v1005 = vpop.permute.xlu0 %1004
        %1006 = vrot.lane.b32.xlu0 %v915, 8
        %v1007 = vpop.permute.xlu0 %1006
        %1008 = vrot.lane.b32.xlu0 %v918, 8
        %v1009 = vpop.permute.xlu0 %1008
        %1010 = vrot.lane.b32.xlu0 %v922, 8
        %v1011 = vpop.permute.xlu0 %1010
        %1012 = vrot.lane.b32.xlu0 %v925, 8
        %v1013 = vpop.permute.xlu0 %1012
        %1014 = vrot.lane.b32.xlu0 %v929, 8
        %v1015 = vpop.permute.xlu0 %1014
        %1016 = vrot.lane.b32.xlu0 %v932, 8
        %v1017 = vpop.permute.xlu0 %1016
        %1018 = vrot.lane.b32.xlu0 %v936, 8
        %v1019 = vpop.permute.xlu0 %1018
        %1020 = vrot.lane.b32.xlu0 %v939, 8
        %v1021 = vpop.permute.xlu0 %1020
        %1022 = vrot.lane.b32.xlu0 %v943, 8
        %v1023 = vpop.permute.xlu0 %1022
        %1024 = vrot.lane.b32.xlu0 %v946, 8
        %v1025 = vpop.permute.xlu0 %1024
        %1026 = vrot.lane.b32.xlu0 %v950, 8
        %v1027 = vpop.permute.xlu0 %1026
        %1028 = vrot.lane.b32.xlu0 %v953, 8
        %v1029 = vpop.permute.xlu0 %1028
        %1030 = vrot.lane.b32.xlu0 %v957, 8
        %v1031 = vpop.permute.xlu0 %1030
        %1032 = vrot.lane.b32.xlu0 %v960, 8
        %v1033 = vpop.permute.xlu0 %1032
        %1034 = vrot.lane.b32.xlu0 %v964, 8
        %v1035 = vpop.permute.xlu0 %1034
        %1036 = vrot.lane.b32.xlu0 %v967, 8
        %v1037 = vpop.permute.xlu0 %1036
        %1038 = vrot.lane.b32.xlu0 %v971, 8
        %v1039 = vpop.permute.xlu0 %1038
        %1040 = vrot.lane.b32.xlu0 %v974, 8
        %v1041 = vpop.permute.xlu0 %1040
        %1042 = vrot.lane.b32.xlu0 %v978, 8
        %v1043 = vpop.permute.xlu0 %1042
        %1044 = vrot.lane.b32.xlu0 %v981, 8
        %v1045 = vpop.permute.xlu0 %1044
        %vm1078 = vcmask 93248
        %1079 = vst.msk [vmem:[#allocation2] sm:$0xf] %vm1078, %v983
        %1080 = vst.msk [vmem:[#allocation2 + $0x4] sm:$0xf] %vm1078, %v985
        %1081 = vst.msk [vmem:[#allocation2 + $0x8] sm:$0xf] %vm1078, %v987
        %1082 = vst.msk [vmem:[#allocation2 + $0xc] sm:$0xf] %vm1078, %v989
        %1083 = vst.msk [vmem:[#allocation2 + $0x10] sm:$0xf] %vm1078, %v991
        %1084 = vst.msk [vmem:[#allocation2 + $0x14] sm:$0xf] %vm1078, %v993
        %1085 = vst.msk [vmem:[#allocation2 + $0x18] sm:$0xf] %vm1078, %v995
        %1086 = vst.msk [vmem:[#allocation2 + $0x1c] sm:$0xf] %vm1078, %v997
        %1087 = vst.msk [vmem:[#allocation2 + $0x20] sm:$0xf] %vm1078, %v999
        %1088 = vst.msk [vmem:[#allocation2 + $0x24] sm:$0xf] %vm1078, %v1001
        %1089 = vst.msk [vmem:[#allocation2 + $0x28] sm:$0xf] %vm1078, %v1003
        %1090 = vst.msk [vmem:[#allocation2 + $0x2c] sm:$0xf] %vm1078, %v1005
        %1091 = vst.msk [vmem:[#allocation2 + $0x30] sm:$0xf] %vm1078, %v1007
        %1092 = vst.msk [vmem:[#allocation2 + $0x34] sm:$0xf] %vm1078, %v1009
        %1093 = vst.msk [vmem:[#allocation2 + $0x38] sm:$0xf] %vm1078, %v1011
        %1094 = vst.msk [vmem:[#allocation2 + $0x3c] sm:$0xf] %vm1078, %v1013
        %1095 = vst.msk [vmem:[#allocation2 + $0x40] sm:$0xf] %vm1078, %v1015
        %1096 = vst.msk [vmem:[#allocation2 + $0x44] sm:$0xf] %vm1078, %v1017
        %1097 = vst.msk [vmem:[#allocation2 + $0x48] sm:$0xf] %vm1078, %v1019
        %1098 = vst.msk [vmem:[#allocation2 + $0x4c] sm:$0xf] %vm1078, %v1021
        %1099 = vst.msk [vmem:[#allocation2 + $0x50] sm:$0xf] %vm1078, %v1023
        %1100 = vst.msk [vmem:[#allocation2 + $0x54] sm:$0xf] %vm1078, %v1025
        %1101 = vst.msk [vmem:[#allocation2 + $0x58] sm:$0xf] %vm1078, %v1027
        %1102 = vst.msk [vmem:[#allocation2 + $0x5c] sm:$0xf] %vm1078, %v1029
        %1103 = vst.msk [vmem:[#allocation2 + $0x60] sm:$0xf] %vm1078, %v1031
        %1104 = vst.msk [vmem:[#allocation2 + $0x64] sm:$0xf] %vm1078, %v1033
        %1105 = vst.msk [vmem:[#allocation2 + $0x68] sm:$0xf] %vm1078, %v1035
        %1106 = vst.msk [vmem:[#allocation2 + $0x6c] sm:$0xf] %vm1078, %v1037
        %1107 = vst.msk [vmem:[#allocation2 + $0x70] sm:$0xf] %vm1078, %v1039
        %1108 = vst.msk [vmem:[#allocation2 + $0x74] sm:$0xf] %vm1078, %v1041
        %1109 = vst.msk [vmem:[#allocation2 + $0x78] sm:$0xf] %vm1078, %v1043
        %1110 = vst.msk [vmem:[#allocation2 + $0x7c] sm:$0xf] %vm1078, %v1045
        %s1111 = sadd.s32 %s185, 1
        %s1112 = smul.u32 %s1111, 3
        %s1113 = smul.addr %s1112, 4
        %s1114 = scalar_lea.vmem %s182, %s1113
        %v1115 = vld [vmem:[%s1114] sm:$0xf]
        %v1116 = vld [vmem:[%s1114 + $0x4] sm:$0xf]
        %v1117 = vld [vmem:[%s1114 + $0x8] sm:$0x1]
        %v1118 = vld [vmem:[%s1114 + $0xc] sm:$0xf]
        %v1119 = vld [vmem:[%s1114 + $0x10] sm:$0xf]
        %v1120 = vld [vmem:[%s1114 + $0x14] sm:$0x1]
        %v1121 = vld [vmem:[%s1114 + $0x18] sm:$0xf]
        %v1122 = vld [vmem:[%s1114 + $0x1c] sm:$0xf]
        %v1123 = vld [vmem:[%s1114 + $0x20] sm:$0x1]
        %v1124 = vld [vmem:[%s1114 + $0x24] sm:$0xf]
        %v1125 = vld [vmem:[%s1114 + $0x28] sm:$0xf]
        %v1126 = vld [vmem:[%s1114 + $0x2c] sm:$0x1]
        %v1127 = vld [vmem:[%s1114 + $0x30] sm:$0xf]
        %v1128 = vld [vmem:[%s1114 + $0x34] sm:$0xf]
        %v1129 = vld [vmem:[%s1114 + $0x38] sm:$0x1]
        %v1130 = vld [vmem:[%s1114 + $0x3c] sm:$0xf]
        %v1131 = vld [vmem:[%s1114 + $0x40] sm:$0xf]
        %v1132 = vld [vmem:[%s1114 + $0x44] sm:$0x1]
        %v1133 = vld [vmem:[%s1114 + $0x48] sm:$0xf]
        %v1134 = vld [vmem:[%s1114 + $0x4c] sm:$0xf]
        %v1135 = vld [vmem:[%s1114 + $0x50] sm:$0x1]
        %v1136 = vld [vmem:[%s1114 + $0x54] sm:$0xf]
        %v1137 = vld [vmem:[%s1114 + $0x58] sm:$0xf]
        %v1138 = vld [vmem:[%s1114 + $0x5c] sm:$0x1]
        %v1139 = vld [vmem:[%s1114 + $0x60] sm:$0xf]
        %v1140 = vld [vmem:[%s1114 + $0x64] sm:$0xf]
        %v1141 = vld [vmem:[%s1114 + $0x68] sm:$0x1]
        %v1142 = vld [vmem:[%s1114 + $0x6c] sm:$0xf]
        %v1143 = vld [vmem:[%s1114 + $0x70] sm:$0xf]
        %v1144 = vld [vmem:[%s1114 + $0x74] sm:$0x1]
        %v1145 = vld [vmem:[%s1114 + $0x78] sm:$0xf]
        %v1146 = vld [vmem:[%s1114 + $0x7c] sm:$0xf]
        %v1147 = vld [vmem:[%s1114 + $0x80] sm:$0x1]
        %v1148 = vld [vmem:[%s1114 + $0x84] sm:$0xf]
        %v1149 = vld [vmem:[%s1114 + $0x88] sm:$0xf]
        %v1150 = vld [vmem:[%s1114 + $0x8c] sm:$0x1]
        %v1151 = vld [vmem:[%s1114 + $0x90] sm:$0xf]
        %v1152 = vld [vmem:[%s1114 + $0x94] sm:$0xf]
        %v1153 = vld [vmem:[%s1114 + $0x98] sm:$0x1]
        %v1154 = vld [vmem:[%s1114 + $0x9c] sm:$0xf]
        %v1155 = vld [vmem:[%s1114 + $0xa0] sm:$0xf]
        %v1156 = vld [vmem:[%s1114 + $0xa4] sm:$0x1]
        %v1157 = vld [vmem:[%s1114 + $0xa8] sm:$0xf]
        %v1158 = vld [vmem:[%s1114 + $0xac] sm:$0xf]
        %v1159 = vld [vmem:[%s1114 + $0xb0] sm:$0x1]
        %v1160 = vld [vmem:[%s1114 + $0xb4] sm:$0xf]
        %v1161 = vld [vmem:[%s1114 + $0xb8] sm:$0xf]
        %v1162 = vld [vmem:[%s1114 + $0xbc] sm:$0x1]
        %1195 = vrot.lane.b32.xlu0 %v1115, 12
        %v1196 = vpop.permute.xlu0 %1195
        %1197 = vrot.lane.b32.xlu0 %v1116, 12
        %v1198 = vpop.permute.xlu0 %1197
        %1199 = vrot.lane.b32.xlu0 %v1118, 12
        %v1200 = vpop.permute.xlu0 %1199
        %1201 = vrot.lane.b32.xlu0 %v1119, 12
        %v1202 = vpop.permute.xlu0 %1201
        %1203 = vrot.lane.b32.xlu0 %v1121, 12
        %v1204 = vpop.permute.xlu0 %1203
        %1205 = vrot.lane.b32.xlu0 %v1122, 12
        %v1206 = vpop.permute.xlu0 %1205
        %1207 = vrot.lane.b32.xlu0 %v1124, 12
        %v1208 = vpop.permute.xlu0 %1207
        %1209 = vrot.lane.b32.xlu0 %v1125, 12
        %v1210 = vpop.permute.xlu0 %1209
        %1211 = vrot.lane.b32.xlu0 %v1127, 12
        %v1212 = vpop.permute.xlu0 %1211
        %1213 = vrot.lane.b32.xlu0 %v1128, 12
        %v1214 = vpop.permute.xlu0 %1213
        %1215 = vrot.lane.b32.xlu0 %v1130, 12
        %v1216 = vpop.permute.xlu0 %1215
        %1217 = vrot.lane.b32.xlu0 %v1131, 12
        %v1218 = vpop.permute.xlu0 %1217
        %1219 = vrot.lane.b32.xlu0 %v1133, 12
        %v1220 = vpop.permute.xlu0 %1219
        %1221 = vrot.lane.b32.xlu0 %v1134, 12
        %v1222 = vpop.permute.xlu0 %1221
        %1223 = vrot.lane.b32.xlu0 %v1136, 12
        %v1224 = vpop.permute.xlu0 %1223
        %1225 = vrot.lane.b32.xlu0 %v1137, 12
        %v1226 = vpop.permute.xlu0 %1225
        %1227 = vrot.lane.b32.xlu0 %v1139, 12
        %v1228 = vpop.permute.xlu0 %1227
        %1229 = vrot.lane.b32.xlu0 %v1140, 12
        %v1230 = vpop.permute.xlu0 %1229
        %1231 = vrot.lane.b32.xlu0 %v1142, 12
        %v1232 = vpop.permute.xlu0 %1231
        %1233 = vrot.lane.b32.xlu0 %v1143, 12
        %v1234 = vpop.permute.xlu0 %1233
        %1235 = vrot.lane.b32.xlu0 %v1145, 12
        %v1236 = vpop.permute.xlu0 %1235
        %1237 = vrot.lane.b32.xlu0 %v1146, 12
        %v1238 = vpop.permute.xlu0 %1237
        %1239 = vrot.lane.b32.xlu0 %v1148, 12
        %v1240 = vpop.permute.xlu0 %1239
        %1241 = vrot.lane.b32.xlu0 %v1149, 12
        %v1242 = vpop.permute.xlu0 %1241
        %1243 = vrot.lane.b32.xlu0 %v1151, 12
        %v1244 = vpop.permute.xlu0 %1243
        %1245 = vrot.lane.b32.xlu0 %v1152, 12
        %v1246 = vpop.permute.xlu0 %1245
        %1247 = vrot.lane.b32.xlu0 %v1154, 12
        %v1248 = vpop.permute.xlu0 %1247
        %1249 = vrot.lane.b32.xlu0 %v1155, 12
        %v1250 = vpop.permute.xlu0 %1249
        %1251 = vrot.lane.b32.xlu0 %v1157, 12
        %v1252 = vpop.permute.xlu0 %1251
        %1253 = vrot.lane.b32.xlu0 %v1158, 12
        %v1254 = vpop.permute.xlu0 %1253
        %1255 = vrot.lane.b32.xlu0 %v1160, 12
        %v1256 = vpop.permute.xlu0 %1255
        %1257 = vrot.lane.b32.xlu0 %v1161, 12
        %v1258 = vpop.permute.xlu0 %1257
        %vm1291 = vcmask 126048
        %1292 = vst.msk [vmem:[#allocation2] sm:$0xf] %vm1291, %v1196
        %1293 = vst.msk [vmem:[#allocation2 + $0x4] sm:$0xf] %vm1291, %v1198
        %1294 = vst.msk [vmem:[#allocation2 + $0x8] sm:$0xf] %vm1291, %v1200
        %1295 = vst.msk [vmem:[#allocation2 + $0xc] sm:$0xf] %vm1291, %v1202
        %1296 = vst.msk [vmem:[#allocation2 + $0x10] sm:$0xf] %vm1291, %v1204
        %1297 = vst.msk [vmem:[#allocation2 + $0x14] sm:$0xf] %vm1291, %v1206
        %1298 = vst.msk [vmem:[#allocation2 + $0x18] sm:$0xf] %vm1291, %v1208
        %1299 = vst.msk [vmem:[#allocation2 + $0x1c] sm:$0xf] %vm1291, %v1210
        %1300 = vst.msk [vmem:[#allocation2 + $0x20] sm:$0xf] %vm1291, %v1212
        %1301 = vst.msk [vmem:[#allocation2 + $0x24] sm:$0xf] %vm1291, %v1214
        %1302 = vst.msk [vmem:[#allocation2 + $0x28] sm:$0xf] %vm1291, %v1216
        %1303 = vst.msk [vmem:[#allocation2 + $0x2c] sm:$0xf] %vm1291, %v1218
        %1304 = vst.msk [vmem:[#allocation2 + $0x30] sm:$0xf] %vm1291, %v1220
        %1305 = vst.msk [vmem:[#allocation2 + $0x34] sm:$0xf] %vm1291, %v1222
        %1306 = vst.msk [vmem:[#allocation2 + $0x38] sm:$0xf] %vm1291, %v1224
        %1307 = vst.msk [vmem:[#allocation2 + $0x3c] sm:$0xf] %vm1291, %v1226
        %1308 = vst.msk [vmem:[#allocation2 + $0x40] sm:$0xf] %vm1291, %v1228
        %1309 = vst.msk [vmem:[#allocation2 + $0x44] sm:$0xf] %vm1291, %v1230
        %1310 = vst.msk [vmem:[#allocation2 + $0x48] sm:$0xf] %vm1291, %v1232
        %1311 = vst.msk [vmem:[#allocation2 + $0x4c] sm:$0xf] %vm1291, %v1234
        %1312 = vst.msk [vmem:[#allocation2 + $0x50] sm:$0xf] %vm1291, %v1236
        %1313 = vst.msk [vmem:[#allocation2 + $0x54] sm:$0xf] %vm1291, %v1238
        %1314 = vst.msk [vmem:[#allocation2 + $0x58] sm:$0xf] %vm1291, %v1240
        %1315 = vst.msk [vmem:[#allocation2 + $0x5c] sm:$0xf] %vm1291, %v1242
        %1316 = vst.msk [vmem:[#allocation2 + $0x60] sm:$0xf] %vm1291, %v1244
        %1317 = vst.msk [vmem:[#allocation2 + $0x64] sm:$0xf] %vm1291, %v1246
        %1318 = vst.msk [vmem:[#allocation2 + $0x68] sm:$0xf] %vm1291, %v1248
        %1319 = vst.msk [vmem:[#allocation2 + $0x6c] sm:$0xf] %vm1291, %v1250
        %1320 = vst.msk [vmem:[#allocation2 + $0x70] sm:$0xf] %vm1291, %v1252
        %1321 = vst.msk [vmem:[#allocation2 + $0x74] sm:$0xf] %vm1291, %v1254
        %1322 = vst.msk [vmem:[#allocation2 + $0x78] sm:$0xf] %vm1291, %v1256
        %1323 = vst.msk [vmem:[#allocation2 + $0x7c] sm:$0xf] %vm1291, %v1258
        %v1325 = vshrl.u32 %v1115, 16
        %v1327 = vrot.slane %v1325, 4
        %v1328 = vshll.u32 %v1115, 16
        %v1330 = vrot.slane %v1328, 5
        %v1331 = vor.u32 %v1327, %v1330
        %v1332 = vrot.slane %v1331, 4
        %v1334 = vshll.u32 %v1116, 16
        %v1336 = vrot.slane %v1334, 5
        %v1337 = vsel %vm305, %v1332, %v1336
        %v1338 = vshrl.u32 %v1116, 16
        %v1340 = vrot.slane %v1338, 4
        %v1341 = vor.u32 %v1340, %v1336
        %v1342 = vrot.slane %v1341, 4
        %v1344 = vshll.u32 %v1117, 16
        %v1346 = vrot.slane %v1344, 5
        %v1347 = vsel %vm305, %v1342, %v1346
        %v1349 = vshrl.u32 %v1118, 16
        %v1351 = vrot.slane %v1349, 4
        %v1352 = vshll.u32 %v1118, 16
        %v1354 = vrot.slane %v1352, 5
        %v1355 = vor.u32 %v1351, %v1354
        %v1356 = vrot.slane %v1355, 4
        %v1358 = vshll.u32 %v1119, 16
        %v1360 = vrot.slane %v1358, 5
        %v1361 = vsel %vm305, %v1356, %v1360
        %v1362 = vshrl.u32 %v1119, 16
        %v1364 = vrot.slane %v1362, 4
        %v1365 = vor.u32 %v1364, %v1360
        %v1366 = vrot.slane %v1365, 4
        %v1368 = vshll.u32 %v1120, 16
        %v1370 = vrot.slane %v1368, 5
        %v1371 = vsel %vm305, %v1366, %v1370
        %v1373 = vshrl.u32 %v1121, 16
        %v1375 = vrot.slane %v1373, 4
        %v1376 = vshll.u32 %v1121, 16
        %v1378 = vrot.slane %v1376, 5
        %v1379 = vor.u32 %v1375, %v1378
        %v1380 = vrot.slane %v1379, 4
        %v1382 = vshll.u32 %v1122, 16
        %v1384 = vrot.slane %v1382, 5
        %v1385 = vsel %vm305, %v1380, %v1384
        %v1386 = vshrl.u32 %v1122, 16
        %v1388 = vrot.slane %v1386, 4
        %v1389 = vor.u32 %v1388, %v1384
        %v1390 = vrot.slane %v1389, 4
        %v1392 = vshll.u32 %v1123, 16
        %v1394 = vrot.slane %v1392, 5
        %v1395 = vsel %vm305, %v1390, %v1394
        %v1397 = vshrl.u32 %v1124, 16
        %v1399 = vrot.slane %v1397, 4
        %v1400 = vshll.u32 %v1124, 16
        %v1402 = vrot.slane %v1400, 5
        %v1403 = vor.u32 %v1399, %v1402
        %v1404 = vrot.slane %v1403, 4
        %v1406 = vshll.u32 %v1125, 16
        %v1408 = vrot.slane %v1406, 5
        %v1409 = vsel %vm305, %v1404, %v1408
        %v1410 = vshrl.u32 %v1125, 16
        %v1412 = vrot.slane %v1410, 4
        %v1413 = vor.u32 %v1412, %v1408
        %v1414 = vrot.slane %v1413, 4
        %v1416 = vshll.u32 %v1126, 16
        %v1418 = vrot.slane %v1416, 5
        %v1419 = vsel %vm305, %v1414, %v1418
        %v1421 = vshrl.u32 %v1127, 16
        %v1423 = vrot.slane %v1421, 4
        %v1424 = vshll.u32 %v1127, 16
        %v1426 = vrot.slane %v1424, 5
        %v1427 = vor.u32 %v1423, %v1426
        %v1428 = vrot.slane %v1427, 4
        %v1430 = vshll.u32 %v1128, 16
        %v1432 = vrot.slane %v1430, 5
        %v1433 = vsel %vm305, %v1428, %v1432
        %v1434 = vshrl.u32 %v1128, 16
        %v1436 = vrot.slane %v1434, 4
        %v1437 = vor.u32 %v1436, %v1432
        %v1438 = vrot.slane %v1437, 4
        %v1440 = vshll.u32 %v1129, 16
        %v1442 = vrot.slane %v1440, 5
        %v1443 = vsel %vm305, %v1438, %v1442
        %v1445 = vshrl.u32 %v1130, 16
        %v1447 = vrot.slane %v1445, 4
        %v1448 = vshll.u32 %v1130, 16
        %v1450 = vrot.slane %v1448, 5
        %v1451 = vor.u32 %v1447, %v1450
        %v1452 = vrot.slane %v1451, 4
        %v1454 = vshll.u32 %v1131, 16
        %v1456 = vrot.slane %v1454, 5
        %v1457 = vsel %vm305, %v1452, %v1456
        %v1458 = vshrl.u32 %v1131, 16
        %v1460 = vrot.slane %v1458, 4
        %v1461 = vor.u32 %v1460, %v1456
        %v1462 = vrot.slane %v1461, 4
        %v1464 = vshll.u32 %v1132, 16
        %v1466 = vrot.slane %v1464, 5
        %v1467 = vsel %vm305, %v1462, %v1466
        %v1469 = vshrl.u32 %v1133, 16
        %v1471 = vrot.slane %v1469, 4
        %v1472 = vshll.u32 %v1133, 16
        %v1474 = vrot.slane %v1472, 5
        %v1475 = vor.u32 %v1471, %v1474
        %v1476 = vrot.slane %v1475, 4
        %v1478 = vshll.u32 %v1134, 16
        %v1480 = vrot.slane %v1478, 5
        %v1481 = vsel %vm305, %v1476, %v1480
        %v1482 = vshrl.u32 %v1134, 16
        %v1484 = vrot.slane %v1482, 4
        %v1485 = vor.u32 %v1484, %v1480
        %v1486 = vrot.slane %v1485, 4
        %v1488 = vshll.u32 %v1135, 16
        %v1490 = vrot.slane %v1488, 5
        %v1491 = vsel %vm305, %v1486, %v1490
        %v1493 = vshrl.u32 %v1136, 16
        %v1495 = vrot.slane %v1493, 4
        %v1496 = vshll.u32 %v1136, 16
        %v1498 = vrot.slane %v1496, 5
        %v1499 = vor.u32 %v1495, %v1498
        %v1500 = vrot.slane %v1499, 4
        %v1502 = vshll.u32 %v1137, 16
        %v1504 = vrot.slane %v1502, 5
        %v1505 = vsel %vm305, %v1500, %v1504
        %v1506 = vshrl.u32 %v1137, 16
        %v1508 = vrot.slane %v1506, 4
        %v1509 = vor.u32 %v1508, %v1504
        %v1510 = vrot.slane %v1509, 4
        %v1512 = vshll.u32 %v1138, 16
        %v1514 = vrot.slane %v1512, 5
        %v1515 = vsel %vm305, %v1510, %v1514
        %v1517 = vshrl.u32 %v1139, 16
        %v1519 = vrot.slane %v1517, 4
        %v1520 = vshll.u32 %v1139, 16
        %v1522 = vrot.slane %v1520, 5
        %v1523 = vor.u32 %v1519, %v1522
        %v1524 = vrot.slane %v1523, 4
        %v1526 = vshll.u32 %v1140, 16
        %v1528 = vrot.slane %v1526, 5
        %v1529 = vsel %vm305, %v1524, %v1528
        %v1530 = vshrl.u32 %v1140, 16
        %v1532 = vrot.slane %v1530, 4
        %v1533 = vor.u32 %v1532, %v1528
        %v1534 = vrot.slane %v1533, 4
        %v1536 = vshll.u32 %v1141, 16
        %v1538 = vrot.slane %v1536, 5
        %v1539 = vsel %vm305, %v1534, %v1538
        %v1541 = vshrl.u32 %v1142, 16
        %v1543 = vrot.slane %v1541, 4
        %v1544 = vshll.u32 %v1142, 16
        %v1546 = vrot.slane %v1544, 5
        %v1547 = vor.u32 %v1543, %v1546
        %v1548 = vrot.slane %v1547, 4
        %v1550 = vshll.u32 %v1143, 16
        %v1552 = vrot.slane %v1550, 5
        %v1553 = vsel %vm305, %v1548, %v1552
        %v1554 = vshrl.u32 %v1143, 16
        %v1556 = vrot.slane %v1554, 4
        %v1557 = vor.u32 %v1556, %v1552
        %v1558 = vrot.slane %v1557, 4
        %v1560 = vshll.u32 %v1144, 16
        %v1562 = vrot.slane %v1560, 5
        %v1563 = vsel %vm305, %v1558, %v1562
        %v1565 = vshrl.u32 %v1145, 16
        %v1567 = vrot.slane %v1565, 4
        %v1568 = vshll.u32 %v1145, 16
        %v1570 = vrot.slane %v1568, 5
        %v1571 = vor.u32 %v1567, %v1570
        %v1572 = vrot.slane %v1571, 4
        %v1574 = vshll.u32 %v1146, 16
        %v1576 = vrot.slane %v1574, 5
        %v1577 = vsel %vm305, %v1572, %v1576
        %v1578 = vshrl.u32 %v1146, 16
        %v1580 = vrot.slane %v1578, 4
        %v1581 = vor.u32 %v1580, %v1576
        %v1582 = vrot.slane %v1581, 4
        %v1584 = vshll.u32 %v1147, 16
        %v1586 = vrot.slane %v1584, 5
        %v1587 = vsel %vm305, %v1582, %v1586
        %v1589 = vshrl.u32 %v1148, 16
        %v1591 = vrot.slane %v1589, 4
        %v1592 = vshll.u32 %v1148, 16
        %v1594 = vrot.slane %v1592, 5
        %v1595 = vor.u32 %v1591, %v1594
        %v1596 = vrot.slane %v1595, 4
        %v1598 = vshll.u32 %v1149, 16
        %v1600 = vrot.slane %v1598, 5
        %v1601 = vsel %vm305, %v1596, %v1600
        %v1602 = vshrl.u32 %v1149, 16
        %v1604 = vrot.slane %v1602, 4
        %v1605 = vor.u32 %v1604, %v1600
        %v1606 = vrot.slane %v1605, 4
        %v1608 = vshll.u32 %v1150, 16
        %v1610 = vrot.slane %v1608, 5
        %v1611 = vsel %vm305, %v1606, %v1610
        %v1613 = vshrl.u32 %v1151, 16
        %v1615 = vrot.slane %v1613, 4
        %v1616 = vshll.u32 %v1151, 16
        %v1618 = vrot.slane %v1616, 5
        %v1619 = vor.u32 %v1615, %v1618
        %v1620 = vrot.slane %v1619, 4
        %v1622 = vshll.u32 %v1152, 16
        %v1624 = vrot.slane %v1622, 5
        %v1625 = vsel %vm305, %v1620, %v1624
        %v1626 = vshrl.u32 %v1152, 16
        %v1628 = vrot.slane %v1626, 4
        %v1629 = vor.u32 %v1628, %v1624
        %v1630 = vrot.slane %v1629, 4
        %v1632 = vshll.u32 %v1153, 16
        %v1634 = vrot.slane %v1632, 5
        %v1635 = vsel %vm305, %v1630, %v1634
        %v1637 = vshrl.u32 %v1154, 16
        %v1639 = vrot.slane %v1637, 4
        %v1640 = vshll.u32 %v1154, 16
        %v1642 = vrot.slane %v1640, 5
        %v1643 = vor.u32 %v1639, %v1642
        %v1644 = vrot.slane %v1643, 4
        %v1646 = vshll.u32 %v1155, 16
        %v1648 = vrot.slane %v1646, 5
        %v1649 = vsel %vm305, %v1644, %v1648
        %v1650 = vshrl.u32 %v1155, 16
        %v1652 = vrot.slane %v1650, 4
        %v1653 = vor.u32 %v1652, %v1648
        %v1654 = vrot.slane %v1653, 4
        %v1656 = vshll.u32 %v1156, 16
        %v1658 = vrot.slane %v1656, 5
        %v1659 = vsel %vm305, %v1654, %v1658
        %v1661 = vshrl.u32 %v1157, 16
        %v1663 = vrot.slane %v1661, 4
        %v1664 = vshll.u32 %v1157, 16
        %v1666 = vrot.slane %v1664, 5
        %v1667 = vor.u32 %v1663, %v1666
        %v1668 = vrot.slane %v1667, 4
        %v1670 = vshll.u32 %v1158, 16
        %v1672 = vrot.slane %v1670, 5
        %v1673 = vsel %vm305, %v1668, %v1672
        %v1674 = vshrl.u32 %v1158, 16
        %v1676 = vrot.slane %v1674, 4
        %v1677 = vor.u32 %v1676, %v1672
        %v1678 = vrot.slane %v1677, 4
        %v1680 = vshll.u32 %v1159, 16
        %v1682 = vrot.slane %v1680, 5
        %v1683 = vsel %vm305, %v1678, %v1682
        %v1685 = vshrl.u32 %v1160, 16
        %v1687 = vrot.slane %v1685, 4
        %v1688 = vshll.u32 %v1160, 16
        %v1690 = vrot.slane %v1688, 5
        %v1691 = vor.u32 %v1687, %v1690
        %v1692 = vrot.slane %v1691, 4
        %v1694 = vshll.u32 %v1161, 16
        %v1696 = vrot.slane %v1694, 5
        %v1697 = vsel %vm305, %v1692, %v1696
        %v1698 = vshrl.u32 %v1161, 16
        %v1700 = vrot.slane %v1698, 4
        %v1701 = vor.u32 %v1700, %v1696
        %v1702 = vrot.slane %v1701, 4
        %v1704 = vshll.u32 %v1162, 16
        %v1706 = vrot.slane %v1704, 5
        %v1707 = vsel %vm305, %v1702, %v1706
        %1708 = vrot.lane.b32.xlu0 %v1337, 16
        %v1709 = vpop.permute.xlu0 %1708
        %1710 = vrot.lane.b32.xlu0 %v1347, 16
        %v1711 = vpop.permute.xlu0 %1710
        %1712 = vrot.lane.b32.xlu0 %v1361, 16
        %v1713 = vpop.permute.xlu0 %1712
        %1714 = vrot.lane.b32.xlu0 %v1371, 16
        %v1715 = vpop.permute.xlu0 %1714
        %1716 = vrot.lane.b32.xlu0 %v1385, 16
        %v1717 = vpop.permute.xlu0 %1716
        %1718 = vrot.lane.b32.xlu0 %v1395, 16
        %v1719 = vpop.permute.xlu0 %1718
        %1720 = vrot.lane.b32.xlu0 %v1409, 16
        %v1721 = vpop.permute.xlu0 %1720
        %1722 = vrot.lane.b32.xlu0 %v1419, 16
        %v1723 = vpop.permute.xlu0 %1722
        %1724 = vrot.lane.b32.xlu0 %v1433, 16
        %v1725 = vpop.permute.xlu0 %1724
        %1726 = vrot.lane.b32.xlu0 %v1443, 16
        %v1727 = vpop.permute.xlu0 %1726
        %1728 = vrot.lane.b32.xlu0 %v1457, 16
        %v1729 = vpop.permute.xlu0 %1728
        %1730 = vrot.lane.b32.xlu0 %v1467, 16
        %v1731 = vpop.permute.xlu0 %1730
        %1732 = vrot.lane.b32.xlu0 %v1481, 16
        %v1733 = vpop.permute.xlu0 %1732
        %1734 = vrot.lane.b32.xlu0 %v1491, 16
        %v1735 = vpop.permute.xlu0 %1734
        %1736 = vrot.lane.b32.xlu0 %v1505, 16
        %v1737 = vpop.permute.xlu0 %1736
        %1738 = vrot.lane.b32.xlu0 %v1515, 16
        %v1739 = vpop.permute.xlu0 %1738
        %1740 = vrot.lane.b32.xlu0 %v1529, 16
        %v1741 = vpop.permute.xlu0 %1740
        %1742 = vrot.lane.b32.xlu0 %v1539, 16
        %v1743 = vpop.permute.xlu0 %1742
        %1744 = vrot.lane.b32.xlu0 %v1553, 16
        %v1745 = vpop.permute.xlu0 %1744
        %1746 = vrot.lane.b32.xlu0 %v1563, 16
        %v1747 = vpop.permute.xlu0 %1746
        %1748 = vrot.lane.b32.xlu0 %v1577, 16
        %v1749 = vpop.permute.xlu0 %1748
        %1750 = vrot.lane.b32.xlu0 %v1587, 16
        %v1751 = vpop.permute.xlu0 %1750
        %1752 = vrot.lane.b32.xlu0 %v1601, 16
        %v1753 = vpop.permute.xlu0 %1752
        %1754 = vrot.lane.b32.xlu0 %v1611, 16
        %v1755 = vpop.permute.xlu0 %1754
        %1756 = vrot.lane.b32.xlu0 %v1625, 16
        %v1757 = vpop.permute.xlu0 %1756
        %1758 = vrot.lane.b32.xlu0 %v1635, 16
        %v1759 = vpop.permute.xlu0 %1758
        %1760 = vrot.lane.b32.xlu0 %v1649, 16
        %v1761 = vpop.permute.xlu0 %1760
        %1762 = vrot.lane.b32.xlu0 %v1659, 16
        %v1763 = vpop.permute.xlu0 %1762
        %1764 = vrot.lane.b32.xlu0 %v1673, 16
        %v1765 = vpop.permute.xlu0 %1764
        %1766 = vrot.lane.b32.xlu0 %v1683, 16
        %v1767 = vpop.permute.xlu0 %1766
        %1768 = vrot.lane.b32.xlu0 %v1697, 16
        %v1769 = vpop.permute.xlu0 %1768
        %1770 = vrot.lane.b32.xlu0 %v1707, 16
        %v1771 = vpop.permute.xlu0 %1770
        %vm1804 = vcmask 158848
        %1805 = vst.msk [vmem:[#allocation2] sm:$0xf] %vm1804, %v1709
        %1806 = vst.msk [vmem:[#allocation2 + $0x4] sm:$0xf] %vm1804, %v1711
        %1807 = vst.msk [vmem:[#allocation2 + $0x8] sm:$0xf] %vm1804, %v1713
        %1808 = vst.msk [vmem:[#allocation2 + $0xc] sm:$0xf] %vm1804, %v1715
        %1809 = vst.msk [vmem:[#allocation2 + $0x10] sm:$0xf] %vm1804, %v1717
        %1810 = vst.msk [vmem:[#allocation2 + $0x14] sm:$0xf] %vm1804, %v1719
        %1811 = vst.msk [vmem:[#allocation2 + $0x18] sm:$0xf] %vm1804, %v1721
        %1812 = vst.msk [vmem:[#allocation2 + $0x1c] sm:$0xf] %vm1804, %v1723
        %1813 = vst.msk [vmem:[#allocation2 + $0x20] sm:$0xf] %vm1804, %v1725
        %1814 = vst.msk [vmem:[#allocation2 + $0x24] sm:$0xf] %vm1804, %v1727
        %1815 = vst.msk [vmem:[#allocation2 + $0x28] sm:$0xf] %vm1804, %v1729
        %1816 = vst.msk [vmem:[#allocation2 + $0x2c] sm:$0xf] %vm1804, %v1731
        %1817 = vst.msk [vmem:[#allocation2 + $0x30] sm:$0xf] %vm1804, %v1733
        %1818 = vst.msk [vmem:[#allocation2 + $0x34] sm:$0xf] %vm1804, %v1735
        %1819 = vst.msk [vmem:[#allocation2 + $0x38] sm:$0xf] %vm1804, %v1737
        %1820 = vst.msk [vmem:[#allocation2 + $0x3c] sm:$0xf] %vm1804, %v1739
        %1821 = vst.msk [vmem:[#allocation2 + $0x40] sm:$0xf] %vm1804, %v1741
        %1822 = vst.msk [vmem:[#allocation2 + $0x44] sm:$0xf] %vm1804, %v1743
        %1823 = vst.msk [vmem:[#allocation2 + $0x48] sm:$0xf] %vm1804, %v1745
        %1824 = vst.msk [vmem:[#allocation2 + $0x4c] sm:$0xf] %vm1804, %v1747
        %1825 = vst.msk [vmem:[#allocation2 + $0x50] sm:$0xf] %vm1804, %v1749
        %1826 = vst.msk [vmem:[#allocation2 + $0x54] sm:$0xf] %vm1804, %v1751
        %1827 = vst.msk [vmem:[#allocation2 + $0x58] sm:$0xf] %vm1804, %v1753
        %1828 = vst.msk [vmem:[#allocation2 + $0x5c] sm:$0xf] %vm1804, %v1755
        %1829 = vst.msk [vmem:[#allocation2 + $0x60] sm:$0xf] %vm1804, %v1757
        %1830 = vst.msk [vmem:[#allocation2 + $0x64] sm:$0xf] %vm1804, %v1759
        %1831 = vst.msk [vmem:[#allocation2 + $0x68] sm:$0xf] %vm1804, %v1761
        %1832 = vst.msk [vmem:[#allocation2 + $0x6c] sm:$0xf] %vm1804, %v1763
        %1833 = vst.msk [vmem:[#allocation2 + $0x70] sm:$0xf] %vm1804, %v1765
        %1834 = vst.msk [vmem:[#allocation2 + $0x74] sm:$0xf] %vm1804, %v1767
        %1835 = vst.msk [vmem:[#allocation2 + $0x78] sm:$0xf] %vm1804, %v1769
        %1836 = vst.msk [vmem:[#allocation2 + $0x7c] sm:$0xf] %vm1804, %v1771
        %v1853 = vrot.slane %v1115, 5
        %v1854 = vrot.slane %v1853, 4
        %v1855 = vrot.slane %v1116, 5
        %v1856 = vsel %vm869, %v1854, %v1855
        %v1857 = vrot.slane %v1855, 4
        %v1858 = vrot.slane %v1117, 5
        %v1859 = vsel %vm869, %v1857, %v1858
        %v1860 = vrot.slane %v1118, 5
        %v1861 = vrot.slane %v1860, 4
        %v1862 = vrot.slane %v1119, 5
        %v1863 = vsel %vm869, %v1861, %v1862
        %v1864 = vrot.slane %v1862, 4
        %v1865 = vrot.slane %v1120, 5
        %v1866 = vsel %vm869, %v1864, %v1865
        %v1867 = vrot.slane %v1121, 5
        %v1868 = vrot.slane %v1867, 4
        %v1869 = vrot.slane %v1122, 5
        %v1870 = vsel %vm869, %v1868, %v1869
        %v1871 = vrot.slane %v1869, 4
        %v1872 = vrot.slane %v1123, 5
        %v1873 = vsel %vm869, %v1871, %v1872
        %v1874 = vrot.slane %v1124, 5
        %v1875 = vrot.slane %v1874, 4
        %v1876 = vrot.slane %v1125, 5
        %v1877 = vsel %vm869, %v1875, %v1876
        %v1878 = vrot.slane %v1876, 4
        %v1879 = vrot.slane %v1126, 5
        %v1880 = vsel %vm869, %v1878, %v1879
        %v1881 = vrot.slane %v1127, 5
        %v1882 = vrot.slane %v1881, 4
        %v1883 = vrot.slane %v1128, 5
        %v1884 = vsel %vm869, %v1882, %v1883
        %v1885 = vrot.slane %v1883, 4
        %v1886 = vrot.slane %v1129, 5
        %v1887 = vsel %vm869, %v1885, %v1886
        %v1888 = vrot.slane %v1130, 5
        %v1889 = vrot.slane %v1888, 4
        %v1890 = vrot.slane %v1131, 5
        %v1891 = vsel %vm869, %v1889, %v1890
        %v1892 = vrot.slane %v1890, 4
        %v1893 = vrot.slane %v1132, 5
        %v1894 = vsel %vm869, %v1892, %v1893
        %v1895 = vrot.slane %v1133, 5
        %v1896 = vrot.slane %v1895, 4
        %v1897 = vrot.slane %v1134, 5
        %v1898 = vsel %vm869, %v1896, %v1897
        %v1899 = vrot.slane %v1897, 4
        %v1900 = vrot.slane %v1135, 5
        %v1901 = vsel %vm869, %v1899, %v1900
        %v1902 = vrot.slane %v1136, 5
        %v1903 = vrot.slane %v1902, 4
        %v1904 = vrot.slane %v1137, 5
        %v1905 = vsel %vm869, %v1903, %v1904
        %v1906 = vrot.slane %v1904, 4
        %v1907 = vrot.slane %v1138, 5
        %v1908 = vsel %vm869, %v1906, %v1907
        %v1909 = vrot.slane %v1139, 5
        %v1910 = vrot.slane %v1909, 4
        %v1911 = vrot.slane %v1140, 5
        %v1912 = vsel %vm869, %v1910, %v1911
        %v1913 = vrot.slane %v1911, 4
        %v1914 = vrot.slane %v1141, 5
        %v1915 = vsel %vm869, %v1913, %v1914
        %v1916 = vrot.slane %v1142, 5
        %v1917 = vrot.slane %v1916, 4
        %v1918 = vrot.slane %v1143, 5
        %v1919 = vsel %vm869, %v1917, %v1918
        %v1920 = vrot.slane %v1918, 4
        %v1921 = vrot.slane %v1144, 5
        %v1922 = vsel %vm869, %v1920, %v1921
        %v1923 = vrot.slane %v1145, 5
        %v1924 = vrot.slane %v1923, 4
        %v1925 = vrot.slane %v1146, 5
        %v1926 = vsel %vm869, %v1924, %v1925
        %v1927 = vrot.slane %v1925, 4
        %v1928 = vrot.slane %v1147, 5
        %v1929 = vsel %vm869, %v1927, %v1928
        %v1930 = vrot.slane %v1148, 5
        %v1931 = vrot.slane %v1930, 4
        %v1932 = vrot.slane %v1149, 5
        %v1933 = vsel %vm869, %v1931, %v1932
        %v1934 = vrot.slane %v1932, 4
        %v1935 = vrot.slane %v1150, 5
        %v1936 = vsel %vm869, %v1934, %v1935
        %v1937 = vrot.slane %v1151, 5
        %v1938 = vrot.slane %v1937, 4
        %v1939 = vrot.slane %v1152, 5
        %v1940 = vsel %vm869, %v1938, %v1939
        %v1941 = vrot.slane %v1939, 4
        %v1942 = vrot.slane %v1153, 5
        %v1943 = vsel %vm869, %v1941, %v1942
        %v1944 = vrot.slane %v1154, 5
        %v1945 = vrot.slane %v1944, 4
        %v1946 = vrot.slane %v1155, 5
        %v1947 = vsel %vm869, %v1945, %v1946
        %v1948 = vrot.slane %v1946, 4
        %v1949 = vrot.slane %v1156, 5
        %v1950 = vsel %vm869, %v1948, %v1949
        %v1951 = vrot.slane %v1157, 5
        %v1952 = vrot.slane %v1951, 4
        %v1953 = vrot.slane %v1158, 5
        %v1954 = vsel %vm869, %v1952, %v1953
        %v1955 = vrot.slane %v1953, 4
        %v1956 = vrot.slane %v1159, 5
        %v1957 = vsel %vm869, %v1955, %v1956
        %v1958 = vrot.slane %v1160, 5
        %v1959 = vrot.slane %v1958, 4
        %v1960 = vrot.slane %v1161, 5
        %v1961 = vsel %vm869, %v1959, %v1960
        %v1962 = vrot.slane %v1960, 4
        %v1963 = vrot.slane %v1162, 5
        %v1964 = vsel %vm869, %v1962, %v1963
        %1965 = vrot.lane.b32.xlu0 %v1856, 20
        %v1966 = vpop.permute.xlu0 %1965
        %1967 = vrot.lane.b32.xlu0 %v1859, 20
        %v1968 = vpop.permute.xlu0 %1967
        %1969 = vrot.lane.b32.xlu0 %v1863, 20
        %v1970 = vpop.permute.xlu0 %1969
        %1971 = vrot.lane.b32.xlu0 %v1866, 20
        %v1972 = vpop.permute.xlu0 %1971
        %1973 = vrot.lane.b32.xlu0 %v1870, 20
        %v1974 = vpop.permute.xlu0 %1973
        %1975 = vrot.lane.b32.xlu0 %v1873, 20
        %v1976 = vpop.permute.xlu0 %1975
        %1977 = vrot.lane.b32.xlu0 %v1877, 20
        %v1978 = vpop.permute.xlu0 %1977
        %1979 = vrot.lane.b32.xlu0 %v1880, 20
        %v1980 = vpop.permute.xlu0 %1979
        %1981 = vrot.lane.b32.xlu0 %v1884, 20
        %v1982 = vpop.permute.xlu0 %1981
        %1983 = vrot.lane.b32.xlu0 %v1887, 20
        %v1984 = vpop.permute.xlu0 %1983
        %1985 = vrot.lane.b32.xlu0 %v1891, 20
        %v1986 = vpop.permute.xlu0 %1985
        %1987 = vrot.lane.b32.xlu0 %v1894, 20
        %v1988 = vpop.permute.xlu0 %1987
        %1989 = vrot.lane.b32.xlu0 %v1898, 20
        %v1990 = vpop.permute.xlu0 %1989
        %1991 = vrot.lane.b32.xlu0 %v1901, 20
        %v1992 = vpop.permute.xlu0 %1991
        %1993 = vrot.lane.b32.xlu0 %v1905, 20
        %v1994 = vpop.permute.xlu0 %1993
        %1995 = vrot.lane.b32.xlu0 %v1908, 20
        %v1996 = vpop.permute.xlu0 %1995
        %1997 = vrot.lane.b32.xlu0 %v1912, 20
        %v1998 = vpop.permute.xlu0 %1997
        %1999 = vrot.lane.b32.xlu0 %v1915, 20
        %v2000 = vpop.permute.xlu0 %1999
        %2001 = vrot.lane.b32.xlu0 %v1919, 20
        %v2002 = vpop.permute.xlu0 %2001
        %2003 = vrot.lane.b32.xlu0 %v1922, 20
        %v2004 = vpop.permute.xlu0 %2003
        %2005 = vrot.lane.b32.xlu0 %v1926, 20
        %v2006 = vpop.permute.xlu0 %2005
        %2007 = vrot.lane.b32.xlu0 %v1929, 20
        %v2008 = vpop.permute.xlu0 %2007
        %2009 = vrot.lane.b32.xlu0 %v1933, 20
        %v2010 = vpop.permute.xlu0 %2009
        %2011 = vrot.lane.b32.xlu0 %v1936, 20
        %v2012 = vpop.permute.xlu0 %2011
        %2013 = vrot.lane.b32.xlu0 %v1940, 20
        %v2014 = vpop.permute.xlu0 %2013
        %2015 = vrot.lane.b32.xlu0 %v1943, 20
        %v2016 = vpop.permute.xlu0 %2015
        %2017 = vrot.lane.b32.xlu0 %v1947, 20
        %v2018 = vpop.permute.xlu0 %2017
        %2019 = vrot.lane.b32.xlu0 %v1950, 20
        %v2020 = vpop.permute.xlu0 %2019
        %2021 = vrot.lane.b32.xlu0 %v1954, 20
        %v2022 = vpop.permute.xlu0 %2021
        %2023 = vrot.lane.b32.xlu0 %v1957, 20
        %v2024 = vpop.permute.xlu0 %2023
        %2025 = vrot.lane.b32.xlu0 %v1961, 20
        %v2026 = vpop.permute.xlu0 %2025
        %2027 = vrot.lane.b32.xlu0 %v1964, 20
        %v2028 = vpop.permute.xlu0 %2027
        %vm2061 = vcmask 191648
        %2062 = vst.msk [vmem:[#allocation2] sm:$0xf] %vm2061, %v1966
        %2063 = vst.msk [vmem:[#allocation2 + $0x4] sm:$0xf] %vm2061, %v1968
        %2064 = vst.msk [vmem:[#allocation2 + $0x8] sm:$0xf] %vm2061, %v1970
        %2065 = vst.msk [vmem:[#allocation2 + $0xc] sm:$0xf] %vm2061, %v1972
        %2066 = vst.msk [vmem:[#allocation2 + $0x10] sm:$0xf] %vm2061, %v1974
        %2067 = vst.msk [vmem:[#allocation2 + $0x14] sm:$0xf] %vm2061, %v1976
        %2068 = vst.msk [vmem:[#allocation2 + $0x18] sm:$0xf] %vm2061, %v1978
        %2069 = vst.msk [vmem:[#allocation2 + $0x1c] sm:$0xf] %vm2061, %v1980
        %2070 = vst.msk [vmem:[#allocation2 + $0x20] sm:$0xf] %vm2061, %v1982
        %2071 = vst.msk [vmem:[#allocation2 + $0x24] sm:$0xf] %vm2061, %v1984
        %2072 = vst.msk [vmem:[#allocation2 + $0x28] sm:$0xf] %vm2061, %v1986
        %2073 = vst.msk [vmem:[#allocation2 + $0x2c] sm:$0xf] %vm2061, %v1988
        %2074 = vst.msk [vmem:[#allocation2 + $0x30] sm:$0xf] %vm2061, %v1990
        %2075 = vst.msk [vmem:[#allocation2 + $0x34] sm:$0xf] %vm2061, %v1992
        %2076 = vst.msk [vmem:[#allocation2 + $0x38] sm:$0xf] %vm2061, %v1994
        %2077 = vst.msk [vmem:[#allocation2 + $0x3c] sm:$0xf] %vm2061, %v1996
        %2078 = vst.msk [vmem:[#allocation2 + $0x40] sm:$0xf] %vm2061, %v1998
        %2079 = vst.msk [vmem:[#allocation2 + $0x44] sm:$0xf] %vm2061, %v2000
        %2080 = vst.msk [vmem:[#allocation2 + $0x48] sm:$0xf] %vm2061, %v2002
        %2081 = vst.msk [vmem:[#allocation2 + $0x4c] sm:$0xf] %vm2061, %v2004
        %2082 = vst.msk [vmem:[#allocation2 + $0x50] sm:$0xf] %vm2061, %v2006
        %2083 = vst.msk [vmem:[#allocation2 + $0x54] sm:$0xf] %vm2061, %v2008
        %2084 = vst.msk [vmem:[#allocation2 + $0x58] sm:$0xf] %vm2061, %v2010
        %2085 = vst.msk [vmem:[#allocation2 + $0x5c] sm:$0xf] %vm2061, %v2012
        %2086 = vst.msk [vmem:[#allocation2 + $0x60] sm:$0xf] %vm2061, %v2014
        %2087 = vst.msk [vmem:[#allocation2 + $0x64] sm:$0xf] %vm2061, %v2016
        %2088 = vst.msk [vmem:[#allocation2 + $0x68] sm:$0xf] %vm2061, %v2018
        %2089 = vst.msk [vmem:[#allocation2 + $0x6c] sm:$0xf] %vm2061, %v2020
        %2090 = vst.msk [vmem:[#allocation2 + $0x70] sm:$0xf] %vm2061, %v2022
        %2091 = vst.msk [vmem:[#allocation2 + $0x74] sm:$0xf] %vm2061, %v2024
        %2092 = vst.msk [vmem:[#allocation2 + $0x78] sm:$0xf] %vm2061, %v2026
        %2093 = vst.msk [vmem:[#allocation2 + $0x7c] sm:$0xf] %vm2061, %v2028
        %s2094 = sadd.s32 %s185, 2
        %s2095 = smul.u32 %s2094, 3
        %s2096 = smul.addr %s2095, 4
        %s2097 = scalar_lea.vmem %s182, %s2096
        %v2098 = vld [vmem:[%s2097] sm:$0xf]
        %v2099 = vld [vmem:[%s2097 + $0x4] sm:$0xf]
        %v2100 = vld [vmem:[%s2097 + $0x8] sm:$0x1]
        %v2101 = vld [vmem:[%s2097 + $0xc] sm:$0xf]
        %v2102 = vld [vmem:[%s2097 + $0x10] sm:$0xf]
        %v2103 = vld [vmem:[%s2097 + $0x14] sm:$0x1]
        %v2104 = vld [vmem:[%s2097 + $0x18] sm:$0xf]
        %v2105 = vld [vmem:[%s2097 + $0x1c] sm:$0xf]
        %v2106 = vld [vmem:[%s2097 + $0x20] sm:$0x1]
        %v2107 = vld [vmem:[%s2097 + $0x24] sm:$0xf]
        %v2108 = vld [vmem:[%s2097 + $0x28] sm:$0xf]
        %v2109 = vld [vmem:[%s2097 + $0x2c] sm:$0x1]
        %v2110 = vld [vmem:[%s2097 + $0x30] sm:$0xf]
        %v2111 = vld [vmem:[%s2097 + $0x34] sm:$0xf]
        %v2112 = vld [vmem:[%s2097 + $0x38] sm:$0x1]
        %v2113 = vld [vmem:[%s2097 + $0x3c] sm:$0xf]
        %v2114 = vld [vmem:[%s2097 + $0x40] sm:$0xf]
        %v2115 = vld [vmem:[%s2097 + $0x44] sm:$0x1]
        %v2116 = vld [vmem:[%s2097 + $0x48] sm:$0xf]
        %v2117 = vld [vmem:[%s2097 + $0x4c] sm:$0xf]
        %v2118 = vld [vmem:[%s2097 + $0x50] sm:$0x1]
        %v2119 = vld [vmem:[%s2097 + $0x54] sm:$0xf]
        %v2120 = vld [vmem:[%s2097 + $0x58] sm:$0xf]
        %v2121 = vld [vmem:[%s2097 + $0x5c] sm:$0x1]
        %v2122 = vld [vmem:[%s2097 + $0x60] sm:$0xf]
        %v2123 = vld [vmem:[%s2097 + $0x64] sm:$0xf]
        %v2124 = vld [vmem:[%s2097 + $0x68] sm:$0x1]
        %v2125 = vld [vmem:[%s2097 + $0x6c] sm:$0xf]
        %v2126 = vld [vmem:[%s2097 + $0x70] sm:$0xf]
        %v2127 = vld [vmem:[%s2097 + $0x74] sm:$0x1]
        %v2128 = vld [vmem:[%s2097 + $0x78] sm:$0xf]
        %v2129 = vld [vmem:[%s2097 + $0x7c] sm:$0xf]
        %v2130 = vld [vmem:[%s2097 + $0x80] sm:$0x1]
        %v2131 = vld [vmem:[%s2097 + $0x84] sm:$0xf]
        %v2132 = vld [vmem:[%s2097 + $0x88] sm:$0xf]
        %v2133 = vld [vmem:[%s2097 + $0x8c] sm:$0x1]
        %v2134 = vld [vmem:[%s2097 + $0x90] sm:$0xf]
        %v2135 = vld [vmem:[%s2097 + $0x94] sm:$0xf]
        %v2136 = vld [vmem:[%s2097 + $0x98] sm:$0x1]
        %v2137 = vld [vmem:[%s2097 + $0x9c] sm:$0xf]
        %v2138 = vld [vmem:[%s2097 + $0xa0] sm:$0xf]
        %v2139 = vld [vmem:[%s2097 + $0xa4] sm:$0x1]
        %v2140 = vld [vmem:[%s2097 + $0xa8] sm:$0xf]
        %v2141 = vld [vmem:[%s2097 + $0xac] sm:$0xf]
        %v2142 = vld [vmem:[%s2097 + $0xb0] sm:$0x1]
        %v2143 = vld [vmem:[%s2097 + $0xb4] sm:$0xf]
        %v2144 = vld [vmem:[%s2097 + $0xb8] sm:$0xf]
        %v2145 = vld [vmem:[%s2097 + $0xbc] sm:$0x1]
        %2178 = vrot.lane.b32.xlu0 %v2098, 24
        %v2179 = vpop.permute.xlu0 %2178
        %2180 = vrot.lane.b32.xlu0 %v2099, 24
        %v2181 = vpop.permute.xlu0 %2180
        %2182 = vrot.lane.b32.xlu0 %v2101, 24
        %v2183 = vpop.permute.xlu0 %2182
        %2184 = vrot.lane.b32.xlu0 %v2102, 24
        %v2185 = vpop.permute.xlu0 %2184
        %2186 = vrot.lane.b32.xlu0 %v2104, 24
        %v2187 = vpop.permute.xlu0 %2186
        %2188 = vrot.lane.b32.xlu0 %v2105, 24
        %v2189 = vpop.permute.xlu0 %2188
        %2190 = vrot.lane.b32.xlu0 %v2107, 24
        %v2191 = vpop.permute.xlu0 %2190
        %2192 = vrot.lane.b32.xlu0 %v2108, 24
        %v2193 = vpop.permute.xlu0 %2192
        %2194 = vrot.lane.b32.xlu0 %v2110, 24
        %v2195 = vpop.permute.xlu0 %2194
        %2196 = vrot.lane.b32.xlu0 %v2111, 24
        %v2197 = vpop.permute.xlu0 %2196
        %2198 = vrot.lane.b32.xlu0 %v2113, 24
        %v2199 = vpop.permute.xlu0 %2198
        %2200 = vrot.lane.b32.xlu0 %v2114, 24
        %v2201 = vpop.permute.xlu0 %2200
        %2202 = vrot.lane.b32.xlu0 %v2116, 24
        %v2203 = vpop.permute.xlu0 %2202
        %2204 = vrot.lane.b32.xlu0 %v2117, 24
        %v2205 = vpop.permute.xlu0 %2204
        %2206 = vrot.lane.b32.xlu0 %v2119, 24
        %v2207 = vpop.permute.xlu0 %2206
        %2208 = vrot.lane.b32.xlu0 %v2120, 24
        %v2209 = vpop.permute.xlu0 %2208
        %2210 = vrot.lane.b32.xlu0 %v2122, 24
        %v2211 = vpop.permute.xlu0 %2210
        %2212 = vrot.lane.b32.xlu0 %v2123, 24
        %v2213 = vpop.permute.xlu0 %2212
        %2214 = vrot.lane.b32.xlu0 %v2125, 24
        %v2215 = vpop.permute.xlu0 %2214
        %2216 = vrot.lane.b32.xlu0 %v2126, 24
        %v2217 = vpop.permute.xlu0 %2216
        %2218 = vrot.lane.b32.xlu0 %v2128, 24
        %v2219 = vpop.permute.xlu0 %2218
        %2220 = vrot.lane.b32.xlu0 %v2129, 24
        %v2221 = vpop.permute.xlu0 %2220
        %2222 = vrot.lane.b32.xlu0 %v2131, 24
        %v2223 = vpop.permute.xlu0 %2222
        %2224 = vrot.lane.b32.xlu0 %v2132, 24
        %v2225 = vpop.permute.xlu0 %2224
        %2226 = vrot.lane.b32.xlu0 %v2134, 24
        %v2227 = vpop.permute.xlu0 %2226
        %2228 = vrot.lane.b32.xlu0 %v2135, 24
        %v2229 = vpop.permute.xlu0 %2228
        %2230 = vrot.lane.b32.xlu0 %v2137, 24
        %v2231 = vpop.permute.xlu0 %2230
        %2232 = vrot.lane.b32.xlu0 %v2138, 24
        %v2233 = vpop.permute.xlu0 %2232
        %2234 = vrot.lane.b32.xlu0 %v2140, 24
        %v2235 = vpop.permute.xlu0 %2234
        %2236 = vrot.lane.b32.xlu0 %v2141, 24
        %v2237 = vpop.permute.xlu0 %2236
        %2238 = vrot.lane.b32.xlu0 %v2143, 24
        %v2239 = vpop.permute.xlu0 %2238
        %2240 = vrot.lane.b32.xlu0 %v2144, 24
        %v2241 = vpop.permute.xlu0 %2240
        %vm2274 = vcmask 224448
        %2275 = vst.msk [vmem:[#allocation2] sm:$0xf] %vm2274, %v2179
        %2276 = vst.msk [vmem:[#allocation2 + $0x4] sm:$0xf] %vm2274, %v2181
        %2277 = vst.msk [vmem:[#allocation2 + $0x8] sm:$0xf] %vm2274, %v2183
        %2278 = vst.msk [vmem:[#allocation2 + $0xc] sm:$0xf] %vm2274, %v2185
        %2279 = vst.msk [vmem:[#allocation2 + $0x10] sm:$0xf] %vm2274, %v2187
        %2280 = vst.msk [vmem:[#allocation2 + $0x14] sm:$0xf] %vm2274, %v2189
        %2281 = vst.msk [vmem:[#allocation2 + $0x18] sm:$0xf] %vm2274, %v2191
        %2282 = vst.msk [vmem:[#allocation2 + $0x1c] sm:$0xf] %vm2274, %v2193
        %2283 = vst.msk [vmem:[#allocation2 + $0x20] sm:$0xf] %vm2274, %v2195
        %2284 = vst.msk [vmem:[#allocation2 + $0x24] sm:$0xf] %vm2274, %v2197
        %2285 = vst.msk [vmem:[#allocation2 + $0x28] sm:$0xf] %vm2274, %v2199
        %2286 = vst.msk [vmem:[#allocation2 + $0x2c] sm:$0xf] %vm2274, %v2201
        %2287 = vst.msk [vmem:[#allocation2 + $0x30] sm:$0xf] %vm2274, %v2203
        %2288 = vst.msk [vmem:[#allocation2 + $0x34] sm:$0xf] %vm2274, %v2205
        %2289 = vst.msk [vmem:[#allocation2 + $0x38] sm:$0xf] %vm2274, %v2207
        %2290 = vst.msk [vmem:[#allocation2 + $0x3c] sm:$0xf] %vm2274, %v2209
        %2291 = vst.msk [vmem:[#allocation2 + $0x40] sm:$0xf] %vm2274, %v2211
        %2292 = vst.msk [vmem:[#allocation2 + $0x44] sm:$0xf] %vm2274, %v2213
        %2293 = vst.msk [vmem:[#allocation2 + $0x48] sm:$0xf] %vm2274, %v2215
        %2294 = vst.msk [vmem:[#allocation2 + $0x4c] sm:$0xf] %vm2274, %v2217
        %2295 = vst.msk [vmem:[#allocation2 + $0x50] sm:$0xf] %vm2274, %v2219
        %2296 = vst.msk [vmem:[#allocation2 + $0x54] sm:$0xf] %vm2274, %v2221
        %2297 = vst.msk [vmem:[#allocation2 + $0x58] sm:$0xf] %vm2274, %v2223
        %2298 = vst.msk [vmem:[#allocation2 + $0x5c] sm:$0xf] %vm2274, %v2225
        %2299 = vst.msk [vmem:[#allocation2 + $0x60] sm:$0xf] %vm2274, %v2227
        %2300 = vst.msk [vmem:[#allocation2 + $0x64] sm:$0xf] %vm2274, %v2229
        %2301 = vst.msk [vmem:[#allocation2 + $0x68] sm:$0xf] %vm2274, %v2231
        %2302 = vst.msk [vmem:[#allocation2 + $0x6c] sm:$0xf] %vm2274, %v2233
        %2303 = vst.msk [vmem:[#allocation2 + $0x70] sm:$0xf] %vm2274, %v2235
        %2304 = vst.msk [vmem:[#allocation2 + $0x74] sm:$0xf] %vm2274, %v2237
        %2305 = vst.msk [vmem:[#allocation2 + $0x78] sm:$0xf] %vm2274, %v2239
        %2306 = vst.msk [vmem:[#allocation2 + $0x7c] sm:$0xf] %vm2274, %v2241
        %v2308 = vshrl.u32 %v2098, 16
        %v2310 = vrot.slane %v2308, 4
        %v2311 = vshll.u32 %v2098, 16
        %v2313 = vrot.slane %v2311, 5
        %v2314 = vor.u32 %v2310, %v2313
        %v2315 = vrot.slane %v2314, 4
        %v2317 = vshll.u32 %v2099, 16
        %v2319 = vrot.slane %v2317, 5
        %v2320 = vsel %vm305, %v2315, %v2319
        %v2321 = vshrl.u32 %v2099, 16
        %v2323 = vrot.slane %v2321, 4
        %v2324 = vor.u32 %v2323, %v2319
        %v2325 = vrot.slane %v2324, 4
        %v2327 = vshll.u32 %v2100, 16
        %v2329 = vrot.slane %v2327, 5
        %v2330 = vsel %vm305, %v2325, %v2329
        %v2332 = vshrl.u32 %v2101, 16
        %v2334 = vrot.slane %v2332, 4
        %v2335 = vshll.u32 %v2101, 16
        %v2337 = vrot.slane %v2335, 5
        %v2338 = vor.u32 %v2334, %v2337
        %v2339 = vrot.slane %v2338, 4
        %v2341 = vshll.u32 %v2102, 16
        %v2343 = vrot.slane %v2341, 5
        %v2344 = vsel %vm305, %v2339, %v2343
        %v2345 = vshrl.u32 %v2102, 16
        %v2347 = vrot.slane %v2345, 4
        %v2348 = vor.u32 %v2347, %v2343
        %v2349 = vrot.slane %v2348, 4
        %v2351 = vshll.u32 %v2103, 16
        %v2353 = vrot.slane %v2351, 5
        %v2354 = vsel %vm305, %v2349, %v2353
        %v2356 = vshrl.u32 %v2104, 16
        %v2358 = vrot.slane %v2356, 4
        %v2359 = vshll.u32 %v2104, 16
        %v2361 = vrot.slane %v2359, 5
        %v2362 = vor.u32 %v2358, %v2361
        %v2363 = vrot.slane %v2362, 4
        %v2365 = vshll.u32 %v2105, 16
        %v2367 = vrot.slane %v2365, 5
        %v2368 = vsel %vm305, %v2363, %v2367
        %v2369 = vshrl.u32 %v2105, 16
        %v2371 = vrot.slane %v2369, 4
        %v2372 = vor.u32 %v2371, %v2367
        %v2373 = vrot.slane %v2372, 4
        %v2375 = vshll.u32 %v2106, 16
        %v2377 = vrot.slane %v2375, 5
        %v2378 = vsel %vm305, %v2373, %v2377
        %v2380 = vshrl.u32 %v2107, 16
        %v2382 = vrot.slane %v2380, 4
        %v2383 = vshll.u32 %v2107, 16
        %v2385 = vrot.slane %v2383, 5
        %v2386 = vor.u32 %v2382, %v2385
        %v2387 = vrot.slane %v2386, 4
        %v2389 = vshll.u32 %v2108, 16
        %v2391 = vrot.slane %v2389, 5
        %v2392 = vsel %vm305, %v2387, %v2391
        %v2393 = vshrl.u32 %v2108, 16
        %v2395 = vrot.slane %v2393, 4
        %v2396 = vor.u32 %v2395, %v2391
        %v2397 = vrot.slane %v2396, 4
        %v2399 = vshll.u32 %v2109, 16
        %v2401 = vrot.slane %v2399, 5
        %v2402 = vsel %vm305, %v2397, %v2401
        %v2404 = vshrl.u32 %v2110, 16
        %v2406 = vrot.slane %v2404, 4
        %v2407 = vshll.u32 %v2110, 16
        %v2409 = vrot.slane %v2407, 5
        %v2410 = vor.u32 %v2406, %v2409
        %v2411 = vrot.slane %v2410, 4
        %v2413 = vshll.u32 %v2111, 16
        %v2415 = vrot.slane %v2413, 5
        %v2416 = vsel %vm305, %v2411, %v2415
        %v2417 = vshrl.u32 %v2111, 16
        %v2419 = vrot.slane %v2417, 4
        %v2420 = vor.u32 %v2419, %v2415
        %v2421 = vrot.slane %v2420, 4
        %v2423 = vshll.u32 %v2112, 16
        %v2425 = vrot.slane %v2423, 5
        %v2426 = vsel %vm305, %v2421, %v2425
        %v2428 = vshrl.u32 %v2113, 16
        %v2430 = vrot.slane %v2428, 4
        %v2431 = vshll.u32 %v2113, 16
        %v2433 = vrot.slane %v2431, 5
        %v2434 = vor.u32 %v2430, %v2433
        %v2435 = vrot.slane %v2434, 4
        %v2437 = vshll.u32 %v2114, 16
        %v2439 = vrot.slane %v2437, 5
        %v2440 = vsel %vm305, %v2435, %v2439
        %v2441 = vshrl.u32 %v2114, 16
        %v2443 = vrot.slane %v2441, 4
        %v2444 = vor.u32 %v2443, %v2439
        %v2445 = vrot.slane %v2444, 4
        %v2447 = vshll.u32 %v2115, 16
        %v2449 = vrot.slane %v2447, 5
        %v2450 = vsel %vm305, %v2445, %v2449
        %v2452 = vshrl.u32 %v2116, 16
        %v2454 = vrot.slane %v2452, 4
        %v2455 = vshll.u32 %v2116, 16
        %v2457 = vrot.slane %v2455, 5
        %v2458 = vor.u32 %v2454, %v2457
        %v2459 = vrot.slane %v2458, 4
        %v2461 = vshll.u32 %v2117, 16
        %v2463 = vrot.slane %v2461, 5
        %v2464 = vsel %vm305, %v2459, %v2463
        %v2465 = vshrl.u32 %v2117, 16
        %v2467 = vrot.slane %v2465, 4
        %v2468 = vor.u32 %v2467, %v2463
        %v2469 = vrot.slane %v2468, 4
        %v2471 = vshll.u32 %v2118, 16
        %v2473 = vrot.slane %v2471, 5
        %v2474 = vsel %vm305, %v2469, %v2473
        %v2476 = vshrl.u32 %v2119, 16
        %v2478 = vrot.slane %v2476, 4
        %v2479 = vshll.u32 %v2119, 16
        %v2481 = vrot.slane %v2479, 5
        %v2482 = vor.u32 %v2478, %v2481
        %v2483 = vrot.slane %v2482, 4
        %v2485 = vshll.u32 %v2120, 16
        %v2487 = vrot.slane %v2485, 5
        %v2488 = vsel %vm305, %v2483, %v2487
        %v2489 = vshrl.u32 %v2120, 16
        %v2491 = vrot.slane %v2489, 4
        %v2492 = vor.u32 %v2491, %v2487
        %v2493 = vrot.slane %v2492, 4
        %v2495 = vshll.u32 %v2121, 16
        %v2497 = vrot.slane %v2495, 5
        %v2498 = vsel %vm305, %v2493, %v2497
        %v2500 = vshrl.u32 %v2122, 16
        %v2502 = vrot.slane %v2500, 4
        %v2503 = vshll.u32 %v2122, 16
        %v2505 = vrot.slane %v2503, 5
        %v2506 = vor.u32 %v2502, %v2505
        %v2507 = vrot.slane %v2506, 4
        %v2509 = vshll.u32 %v2123, 16
        %v2511 = vrot.slane %v2509, 5
        %v2512 = vsel %vm305, %v2507, %v2511
        %v2513 = vshrl.u32 %v2123, 16
        %v2515 = vrot.slane %v2513, 4
        %v2516 = vor.u32 %v2515, %v2511
        %v2517 = vrot.slane %v2516, 4
        %v2519 = vshll.u32 %v2124, 16
        %v2521 = vrot.slane %v2519, 5
        %v2522 = vsel %vm305, %v2517, %v2521
        %v2524 = vshrl.u32 %v2125, 16
        %v2526 = vrot.slane %v2524, 4
        %v2527 = vshll.u32 %v2125, 16
        %v2529 = vrot.slane %v2527, 5
        %v2530 = vor.u32 %v2526, %v2529
        %v2531 = vrot.slane %v2530, 4
        %v2533 = vshll.u32 %v2126, 16
        %v2535 = vrot.slane %v2533, 5
        %v2536 = vsel %vm305, %v2531, %v2535
        %v2537 = vshrl.u32 %v2126, 16
        %v2539 = vrot.slane %v2537, 4
        %v2540 = vor.u32 %v2539, %v2535
        %v2541 = vrot.slane %v2540, 4
        %v2543 = vshll.u32 %v2127, 16
        %v2545 = vrot.slane %v2543, 5
        %v2546 = vsel %vm305, %v2541, %v2545
        %v2548 = vshrl.u32 %v2128, 16
        %v2550 = vrot.slane %v2548, 4
        %v2551 = vshll.u32 %v2128, 16
        %v2553 = vrot.slane %v2551, 5
        %v2554 = vor.u32 %v2550, %v2553
        %v2555 = vrot.slane %v2554, 4
        %v2557 = vshll.u32 %v2129, 16
        %v2559 = vrot.slane %v2557, 5
        %v2560 = vsel %vm305, %v2555, %v2559
        %v2561 = vshrl.u32 %v2129, 16
        %v2563 = vrot.slane %v2561, 4
        %v2564 = vor.u32 %v2563, %v2559
        %v2565 = vrot.slane %v2564, 4
        %v2567 = vshll.u32 %v2130, 16
        %v2569 = vrot.slane %v2567, 5
        %v2570 = vsel %vm305, %v2565, %v2569
        %v2572 = vshrl.u32 %v2131, 16
        %v2574 = vrot.slane %v2572, 4
        %v2575 = vshll.u32 %v2131, 16
        %v2577 = vrot.slane %v2575, 5
        %v2578 = vor.u32 %v2574, %v2577
        %v2579 = vrot.slane %v2578, 4
        %v2581 = vshll.u32 %v2132, 16
        %v2583 = vrot.slane %v2581, 5
        %v2584 = vsel %vm305, %v2579, %v2583
        %v2585 = vshrl.u32 %v2132, 16
        %v2587 = vrot.slane %v2585, 4
        %v2588 = vor.u32 %v2587, %v2583
        %v2589 = vrot.slane %v2588, 4
        %v2591 = vshll.u32 %v2133, 16
        %v2593 = vrot.slane %v2591, 5
        %v2594 = vsel %vm305, %v2589, %v2593
        %v2596 = vshrl.u32 %v2134, 16
        %v2598 = vrot.slane %v2596, 4
        %v2599 = vshll.u32 %v2134, 16
        %v2601 = vrot.slane %v2599, 5
        %v2602 = vor.u32 %v2598, %v2601
        %v2603 = vrot.slane %v2602, 4
        %v2605 = vshll.u32 %v2135, 16
        %v2607 = vrot.slane %v2605, 5
        %v2608 = vsel %vm305, %v2603, %v2607
        %v2609 = vshrl.u32 %v2135, 16
        %v2611 = vrot.slane %v2609, 4
        %v2612 = vor.u32 %v2611, %v2607
        %v2613 = vrot.slane %v2612, 4
        %v2615 = vshll.u32 %v2136, 16
        %v2617 = vrot.slane %v2615, 5
        %v2618 = vsel %vm305, %v2613, %v2617
        %v2620 = vshrl.u32 %v2137, 16
        %v2622 = vrot.slane %v2620, 4
        %v2623 = vshll.u32 %v2137, 16
        %v2625 = vrot.slane %v2623, 5
        %v2626 = vor.u32 %v2622, %v2625
        %v2627 = vrot.slane %v2626, 4
        %v2629 = vshll.u32 %v2138, 16
        %v2631 = vrot.slane %v2629, 5
        %v2632 = vsel %vm305, %v2627, %v2631
        %v2633 = vshrl.u32 %v2138, 16
        %v2635 = vrot.slane %v2633, 4
        %v2636 = vor.u32 %v2635, %v2631
        %v2637 = vrot.slane %v2636, 4
        %v2639 = vshll.u32 %v2139, 16
        %v2641 = vrot.slane %v2639, 5
        %v2642 = vsel %vm305, %v2637, %v2641
        %v2644 = vshrl.u32 %v2140, 16
        %v2646 = vrot.slane %v2644, 4
        %v2647 = vshll.u32 %v2140, 16
        %v2649 = vrot.slane %v2647, 5
        %v2650 = vor.u32 %v2646, %v2649
        %v2651 = vrot.slane %v2650, 4
        %v2653 = vshll.u32 %v2141, 16
        %v2655 = vrot.slane %v2653, 5
        %v2656 = vsel %vm305, %v2651, %v2655
        %v2657 = vshrl.u32 %v2141, 16
        %v2659 = vrot.slane %v2657, 4
        %v2660 = vor.u32 %v2659, %v2655
        %v2661 = vrot.slane %v2660, 4
        %v2663 = vshll.u32 %v2142, 16
        %v2665 = vrot.slane %v2663, 5
        %v2666 = vsel %vm305, %v2661, %v2665
        %v2668 = vshrl.u32 %v2143, 16
        %v2670 = vrot.slane %v2668, 4
        %v2671 = vshll.u32 %v2143, 16
        %v2673 = vrot.slane %v2671, 5
        %v2674 = vor.u32 %v2670, %v2673
        %v2675 = vrot.slane %v2674, 4
        %v2677 = vshll.u32 %v2144, 16
        %v2679 = vrot.slane %v2677, 5
        %v2680 = vsel %vm305, %v2675, %v2679
        %v2681 = vshrl.u32 %v2144, 16
        %v2683 = vrot.slane %v2681, 4
        %v2684 = vor.u32 %v2683, %v2679
        %v2685 = vrot.slane %v2684, 4
        %v2687 = vshll.u32 %v2145, 16
        %v2689 = vrot.slane %v2687, 5
        %v2690 = vsel %vm305, %v2685, %v2689
        %2691 = vrot.lane.b32.xlu0 %v2320, 28
        %v2692 = vpop.permute.xlu0 %2691
        %2693 = vrot.lane.b32.xlu0 %v2330, 28
        %v2694 = vpop.permute.xlu0 %2693
        %2695 = vrot.lane.b32.xlu0 %v2344, 28
        %v2696 = vpop.permute.xlu0 %2695
        %2697 = vrot.lane.b32.xlu0 %v2354, 28
        %v2698 = vpop.permute.xlu0 %2697
        %2699 = vrot.lane.b32.xlu0 %v2368, 28
        %v2700 = vpop.permute.xlu0 %2699
        %2701 = vrot.lane.b32.xlu0 %v2378, 28
        %v2702 = vpop.permute.xlu0 %2701
        %2703 = vrot.lane.b32.xlu0 %v2392, 28
        %v2704 = vpop.permute.xlu0 %2703
        %2705 = vrot.lane.b32.xlu0 %v2402, 28
        %v2706 = vpop.permute.xlu0 %2705
        %2707 = vrot.lane.b32.xlu0 %v2416, 28
        %v2708 = vpop.permute.xlu0 %2707
        %2709 = vrot.lane.b32.xlu0 %v2426, 28
        %v2710 = vpop.permute.xlu0 %2709
        %2711 = vrot.lane.b32.xlu0 %v2440, 28
        %v2712 = vpop.permute.xlu0 %2711
        %2713 = vrot.lane.b32.xlu0 %v2450, 28
        %v2714 = vpop.permute.xlu0 %2713
        %2715 = vrot.lane.b32.xlu0 %v2464, 28
        %v2716 = vpop.permute.xlu0 %2715
        %2717 = vrot.lane.b32.xlu0 %v2474, 28
        %v2718 = vpop.permute.xlu0 %2717
        %2719 = vrot.lane.b32.xlu0 %v2488, 28
        %v2720 = vpop.permute.xlu0 %2719
        %2721 = vrot.lane.b32.xlu0 %v2498, 28
        %v2722 = vpop.permute.xlu0 %2721
        %2723 = vrot.lane.b32.xlu0 %v2512, 28
        %v2724 = vpop.permute.xlu0 %2723
        %2725 = vrot.lane.b32.xlu0 %v2522, 28
        %v2726 = vpop.permute.xlu0 %2725
        %2727 = vrot.lane.b32.xlu0 %v2536, 28
        %v2728 = vpop.permute.xlu0 %2727
        %2729 = vrot.lane.b32.xlu0 %v2546, 28
        %v2730 = vpop.permute.xlu0 %2729
        %2731 = vrot.lane.b32.xlu0 %v2560, 28
        %v2732 = vpop.permute.xlu0 %2731
        %2733 = vrot.lane.b32.xlu0 %v2570, 28
        %v2734 = vpop.permute.xlu0 %2733
        %2735 = vrot.lane.b32.xlu0 %v2584, 28
        %v2736 = vpop.permute.xlu0 %2735
        %2737 = vrot.lane.b32.xlu0 %v2594, 28
        %v2738 = vpop.permute.xlu0 %2737
        %2739 = vrot.lane.b32.xlu0 %v2608, 28
        %v2740 = vpop.permute.xlu0 %2739
        %2741 = vrot.lane.b32.xlu0 %v2618, 28
        %v2742 = vpop.permute.xlu0 %2741
        %2743 = vrot.lane.b32.xlu0 %v2632, 28
        %v2744 = vpop.permute.xlu0 %2743
        %2745 = vrot.lane.b32.xlu0 %v2642, 28
        %v2746 = vpop.permute.xlu0 %2745
        %2747 = vrot.lane.b32.xlu0 %v2656, 28
        %v2748 = vpop.permute.xlu0 %2747
        %2749 = vrot.lane.b32.xlu0 %v2666, 28
        %v2750 = vpop.permute.xlu0 %2749
        %2751 = vrot.lane.b32.xlu0 %v2680, 28
        %v2752 = vpop.permute.xlu0 %2751
        %2753 = vrot.lane.b32.xlu0 %v2690, 28
        %v2754 = vpop.permute.xlu0 %2753
        %vm2787 = vcmask 257248
        %2788 = vst.msk [vmem:[#allocation2] sm:$0xf] %vm2787, %v2692
        %2789 = vst.msk [vmem:[#allocation2 + $0x4] sm:$0xf] %vm2787, %v2694
        %2790 = vst.msk [vmem:[#allocation2 + $0x8] sm:$0xf] %vm2787, %v2696
        %2791 = vst.msk [vmem:[#allocation2 + $0xc] sm:$0xf] %vm2787, %v2698
        %2792 = vst.msk [vmem:[#allocation2 + $0x10] sm:$0xf] %vm2787, %v2700
        %2793 = vst.msk [vmem:[#allocation2 + $0x14] sm:$0xf] %vm2787, %v2702
        %2794 = vst.msk [vmem:[#allocation2 + $0x18] sm:$0xf] %vm2787, %v2704
        %2795 = vst.msk [vmem:[#allocation2 + $0x1c] sm:$0xf] %vm2787, %v2706
        %2796 = vst.msk [vmem:[#allocation2 + $0x20] sm:$0xf] %vm2787, %v2708
        %2797 = vst.msk [vmem:[#allocation2 + $0x24] sm:$0xf] %vm2787, %v2710
        %2798 = vst.msk [vmem:[#allocation2 + $0x28] sm:$0xf] %vm2787, %v2712
        %2799 = vst.msk [vmem:[#allocation2 + $0x2c] sm:$0xf] %vm2787, %v2714
        %2800 = vst.msk [vmem:[#allocation2 + $0x30] sm:$0xf] %vm2787, %v2716
        %2801 = vst.msk [vmem:[#allocation2 + $0x34] sm:$0xf] %vm2787, %v2718
        %2802 = vst.msk [vmem:[#allocation2 + $0x38] sm:$0xf] %vm2787, %v2720
        %2803 = vst.msk [vmem:[#allocation2 + $0x3c] sm:$0xf] %vm2787, %v2722
        %2804 = vst.msk [vmem:[#allocation2 + $0x40] sm:$0xf] %vm2787, %v2724
        %2805 = vst.msk [vmem:[#allocation2 + $0x44] sm:$0xf] %vm2787, %v2726
        %2806 = vst.msk [vmem:[#allocation2 + $0x48] sm:$0xf] %vm2787, %v2728
        %2807 = vst.msk [vmem:[#allocation2 + $0x4c] sm:$0xf] %vm2787, %v2730
        %2808 = vst.msk [vmem:[#allocation2 + $0x50] sm:$0xf] %vm2787, %v2732
        %2809 = vst.msk [vmem:[#allocation2 + $0x54] sm:$0xf] %vm2787, %v2734
        %2810 = vst.msk [vmem:[#allocation2 + $0x58] sm:$0xf] %vm2787, %v2736
        %2811 = vst.msk [vmem:[#allocation2 + $0x5c] sm:$0xf] %vm2787, %v2738
        %2812 = vst.msk [vmem:[#allocation2 + $0x60] sm:$0xf] %vm2787, %v2740
        %2813 = vst.msk [vmem:[#allocation2 + $0x64] sm:$0xf] %vm2787, %v2742
        %2814 = vst.msk [vmem:[#allocation2 + $0x68] sm:$0xf] %vm2787, %v2744
        %2815 = vst.msk [vmem:[#allocation2 + $0x6c] sm:$0xf] %vm2787, %v2746
        %2816 = vst.msk [vmem:[#allocation2 + $0x70] sm:$0xf] %vm2787, %v2748
        %2817 = vst.msk [vmem:[#allocation2 + $0x74] sm:$0xf] %vm2787, %v2750
        %2818 = vst.msk [vmem:[#allocation2 + $0x78] sm:$0xf] %vm2787, %v2752
        %2819 = vst.msk [vmem:[#allocation2 + $0x7c] sm:$0xf] %vm2787, %v2754
        %v2836 = vrot.slane %v2098, 5
        %v2837 = vrot.slane %v2836, 4
        %v2838 = vrot.slane %v2099, 5
        %v2839 = vsel %vm869, %v2837, %v2838
        %v2840 = vrot.slane %v2838, 4
        %v2841 = vrot.slane %v2100, 5
        %v2842 = vsel %vm869, %v2840, %v2841
        %v2843 = vrot.slane %v2101, 5
        %v2844 = vrot.slane %v2843, 4
        %v2845 = vrot.slane %v2102, 5
        %v2846 = vsel %vm869, %v2844, %v2845
        %v2847 = vrot.slane %v2845, 4
        %v2848 = vrot.slane %v2103, 5
        %v2849 = vsel %vm869, %v2847, %v2848
        %v2850 = vrot.slane %v2104, 5
        %v2851 = vrot.slane %v2850, 4
        %v2852 = vrot.slane %v2105, 5
        %v2853 = vsel %vm869, %v2851, %v2852
        %v2854 = vrot.slane %v2852, 4
        %v2855 = vrot.slane %v2106, 5
        %v2856 = vsel %vm869, %v2854, %v2855
        %v2857 = vrot.slane %v2107, 5
        %v2858 = vrot.slane %v2857, 4
        %v2859 = vrot.slane %v2108, 5
        %v2860 = vsel %vm869, %v2858, %v2859
        %v2861 = vrot.slane %v2859, 4
        %v2862 = vrot.slane %v2109, 5
        %v2863 = vsel %vm869, %v2861, %v2862
        %v2864 = vrot.slane %v2110, 5
        %v2865 = vrot.slane %v2864, 4
        %v2866 = vrot.slane %v2111, 5
        %v2867 = vsel %vm869, %v2865, %v2866
        %v2868 = vrot.slane %v2866, 4
        %v2869 = vrot.slane %v2112, 5
        %v2870 = vsel %vm869, %v2868, %v2869
        %v2871 = vrot.slane %v2113, 5
        %v2872 = vrot.slane %v2871, 4
        %v2873 = vrot.slane %v2114, 5
        %v2874 = vsel %vm869, %v2872, %v2873
        %v2875 = vrot.slane %v2873, 4
        %v2876 = vrot.slane %v2115, 5
        %v2877 = vsel %vm869, %v2875, %v2876
        %v2878 = vrot.slane %v2116, 5
        %v2879 = vrot.slane %v2878, 4
        %v2880 = vrot.slane %v2117, 5
        %v2881 = vsel %vm869, %v2879, %v2880
        %v2882 = vrot.slane %v2880, 4
        %v2883 = vrot.slane %v2118, 5
        %v2884 = vsel %vm869, %v2882, %v2883
        %v2885 = vrot.slane %v2119, 5
        %v2886 = vrot.slane %v2885, 4
        %v2887 = vrot.slane %v2120, 5
        %v2888 = vsel %vm869, %v2886, %v2887
        %v2889 = vrot.slane %v2887, 4
        %v2890 = vrot.slane %v2121, 5
        %v2891 = vsel %vm869, %v2889, %v2890
        %v2892 = vrot.slane %v2122, 5
        %v2893 = vrot.slane %v2892, 4
        %v2894 = vrot.slane %v2123, 5
        %v2895 = vsel %vm869, %v2893, %v2894
        %v2896 = vrot.slane %v2894, 4
        %v2897 = vrot.slane %v2124, 5
        %v2898 = vsel %vm869, %v2896, %v2897
        %v2899 = vrot.slane %v2125, 5
        %v2900 = vrot.slane %v2899, 4
        %v2901 = vrot.slane %v2126, 5
        %v2902 = vsel %vm869, %v2900, %v2901
        %v2903 = vrot.slane %v2901, 4
        %v2904 = vrot.slane %v2127, 5
        %v2905 = vsel %vm869, %v2903, %v2904
        %v2906 = vrot.slane %v2128, 5
        %v2907 = vrot.slane %v2906, 4
        %v2908 = vrot.slane %v2129, 5
        %v2909 = vsel %vm869, %v2907, %v2908
        %v2910 = vrot.slane %v2908, 4
        %v2911 = vrot.slane %v2130, 5
        %v2912 = vsel %vm869, %v2910, %v2911
        %v2913 = vrot.slane %v2131, 5
        %v2914 = vrot.slane %v2913, 4
        %v2915 = vrot.slane %v2132, 5
        %v2916 = vsel %vm869, %v2914, %v2915
        %v2917 = vrot.slane %v2915, 4
        %v2918 = vrot.slane %v2133, 5
        %v2919 = vsel %vm869, %v2917, %v2918
        %v2920 = vrot.slane %v2134, 5
        %v2921 = vrot.slane %v2920, 4
        %v2922 = vrot.slane %v2135, 5
        %v2923 = vsel %vm869, %v2921, %v2922
        %v2924 = vrot.slane %v2922, 4
        %v2925 = vrot.slane %v2136, 5
        %v2926 = vsel %vm869, %v2924, %v2925
        %v2927 = vrot.slane %v2137, 5
        %v2928 = vrot.slane %v2927, 4
        %v2929 = vrot.slane %v2138, 5
        %v2930 = vsel %vm869, %v2928, %v2929
        %v2931 = vrot.slane %v2929, 4
        %v2932 = vrot.slane %v2139, 5
        %v2933 = vsel %vm869, %v2931, %v2932
        %v2934 = vrot.slane %v2140, 5
        %v2935 = vrot.slane %v2934, 4
        %v2936 = vrot.slane %v2141, 5
        %v2937 = vsel %vm869, %v2935, %v2936
        %v2938 = vrot.slane %v2936, 4
        %v2939 = vrot.slane %v2142, 5
        %v2940 = vsel %vm869, %v2938, %v2939
        %v2941 = vrot.slane %v2143, 5
        %v2942 = vrot.slane %v2941, 4
        %v2943 = vrot.slane %v2144, 5
        %v2944 = vsel %vm869, %v2942, %v2943
        %v2945 = vrot.slane %v2943, 4
        %v2946 = vrot.slane %v2145, 5
        %v2947 = vsel %vm869, %v2945, %v2946
        %2948 = vrot.lane.b32.xlu0 %v2839, 32
        %v2949 = vpop.permute.xlu0 %2948
        %2950 = vrot.lane.b32.xlu0 %v2842, 32
        %v2951 = vpop.permute.xlu0 %2950
        %2952 = vrot.lane.b32.xlu0 %v2846, 32
        %v2953 = vpop.permute.xlu0 %2952
        %2954 = vrot.lane.b32.xlu0 %v2849, 32
        %v2955 = vpop.permute.xlu0 %2954
        %2956 = vrot.lane.b32.xlu0 %v2853, 32
        %v2957 = vpop.permute.xlu0 %2956
        %2958 = vrot.lane.b32.xlu0 %v2856, 32
        %v2959 = vpop.permute.xlu0 %2958
        %2960 = vrot.lane.b32.xlu0 %v2860, 32
        %v2961 = vpop.permute.xlu0 %2960
        %2962 = vrot.lane.b32.xlu0 %v2863, 32
        %v2963 = vpop.permute.xlu0 %2962
        %2964 = vrot.lane.b32.xlu0 %v2867, 32
        %v2965 = vpop.permute.xlu0 %2964
        %2966 = vrot.lane.b32.xlu0 %v2870, 32
        %v2967 = vpop.permute.xlu0 %2966
        %2968 = vrot.lane.b32.xlu0 %v2874, 32
        %v2969 = vpop.permute.xlu0 %2968
        %2970 = vrot.lane.b32.xlu0 %v2877, 32
        %v2971 = vpop.permute.xlu0 %2970
        %2972 = vrot.lane.b32.xlu0 %v2881, 32
        %v2973 = vpop.permute.xlu0 %2972
        %2974 = vrot.lane.b32.xlu0 %v2884, 32
        %v2975 = vpop.permute.xlu0 %2974
        %2976 = vrot.lane.b32.xlu0 %v2888, 32
        %v2977 = vpop.permute.xlu0 %2976
        %2978 = vrot.lane.b32.xlu0 %v2891, 32
        %v2979 = vpop.permute.xlu0 %2978
        %2980 = vrot.lane.b32.xlu0 %v2895, 32
        %v2981 = vpop.permute.xlu0 %2980
        %2982 = vrot.lane.b32.xlu0 %v2898, 32
        %v2983 = vpop.permute.xlu0 %2982
        %2984 = vrot.lane.b32.xlu0 %v2902, 32
        %v2985 = vpop.permute.xlu0 %2984
        %2986 = vrot.lane.b32.xlu0 %v2905, 32
        %v2987 = vpop.permute.xlu0 %2986
        %2988 = vrot.lane.b32.xlu0 %v2909, 32
        %v2989 = vpop.permute.xlu0 %2988
        %2990 = vrot.lane.b32.xlu0 %v2912, 32
        %v2991 = vpop.permute.xlu0 %2990
        %2992 = vrot.lane.b32.xlu0 %v2916, 32
        %v2993 = vpop.permute.xlu0 %2992
        %2994 = vrot.lane.b32.xlu0 %v2919, 32
        %v2995 = vpop.permute.xlu0 %2994
        %2996 = vrot.lane.b32.xlu0 %v2923, 32
        %v2997 = vpop.permute.xlu0 %2996
        %2998 = vrot.lane.b32.xlu0 %v2926, 32
        %v2999 = vpop.permute.xlu0 %2998
        %3000 = vrot.lane.b32.xlu0 %v2930, 32
        %v3001 = vpop.permute.xlu0 %3000
        %3002 = vrot.lane.b32.xlu0 %v2933, 32
        %v3003 = vpop.permute.xlu0 %3002
        %3004 = vrot.lane.b32.xlu0 %v2937, 32
        %v3005 = vpop.permute.xlu0 %3004
        %3006 = vrot.lane.b32.xlu0 %v2940, 32
        %v3007 = vpop.permute.xlu0 %3006
        %3008 = vrot.lane.b32.xlu0 %v2944, 32
        %v3009 = vpop.permute.xlu0 %3008
        %3010 = vrot.lane.b32.xlu0 %v2947, 32
        %v3011 = vpop.permute.xlu0 %3010
        %vm3044 = vcmask 290048
        %3045 = vst.msk [vmem:[#allocation2] sm:$0xf] %vm3044, %v2949
        %3046 = vst.msk [vmem:[#allocation2 + $0x4] sm:$0xf] %vm3044, %v2951
        %3047 = vst.msk [vmem:[#allocation2 + $0x8] sm:$0xf] %vm3044, %v2953
        %3048 = vst.msk [vmem:[#allocation2 + $0xc] sm:$0xf] %vm3044, %v2955
        %3049 = vst.msk [vmem:[#allocation2 + $0x10] sm:$0xf] %vm3044, %v2957
        %3050 = vst.msk [vmem:[#allocation2 + $0x14] sm:$0xf] %vm3044, %v2959
        %3051 = vst.msk [vmem:[#allocation2 + $0x18] sm:$0xf] %vm3044, %v2961
        %3052 = vst.msk [vmem:[#allocation2 + $0x1c] sm:$0xf] %vm3044, %v2963
        %3053 = vst.msk [vmem:[#allocation2 + $0x20] sm:$0xf] %vm3044, %v2965
        %3054 = vst.msk [vmem:[#allocation2 + $0x24] sm:$0xf] %vm3044, %v2967
        %3055 = vst.msk [vmem:[#allocation2 + $0x28] sm:$0xf] %vm3044, %v2969
        %3056 = vst.msk [vmem:[#allocation2 + $0x2c] sm:$0xf] %vm3044, %v2971
        %3057 = vst.msk [vmem:[#allocation2 + $0x30] sm:$0xf] %vm3044, %v2973
        %3058 = vst.msk [vmem:[#allocation2 + $0x34] sm:$0xf] %vm3044, %v2975
        %3059 = vst.msk [vmem:[#allocation2 + $0x38] sm:$0xf] %vm3044, %v2977
        %3060 = vst.msk [vmem:[#allocation2 + $0x3c] sm:$0xf] %vm3044, %v2979
        %3061 = vst.msk [vmem:[#allocation2 + $0x40] sm:$0xf] %vm3044, %v2981
        %3062 = vst.msk [vmem:[#allocation2 + $0x44] sm:$0xf] %vm3044, %v2983
        %3063 = vst.msk [vmem:[#allocation2 + $0x48] sm:$0xf] %vm3044, %v2985
        %3064 = vst.msk [vmem:[#allocation2 + $0x4c] sm:$0xf] %vm3044, %v2987
        %3065 = vst.msk [vmem:[#allocation2 + $0x50] sm:$0xf] %vm3044, %v2989
        %3066 = vst.msk [vmem:[#allocation2 + $0x54] sm:$0xf] %vm3044, %v2991
        %3067 = vst.msk [vmem:[#allocation2 + $0x58] sm:$0xf] %vm3044, %v2993
        %3068 = vst.msk [vmem:[#allocation2 + $0x5c] sm:$0xf] %vm3044, %v2995
        %3069 = vst.msk [vmem:[#allocation2 + $0x60] sm:$0xf] %vm3044, %v2997
        %3070 = vst.msk [vmem:[#allocation2 + $0x64] sm:$0xf] %vm3044, %v2999
        %3071 = vst.msk [vmem:[#allocation2 + $0x68] sm:$0xf] %vm3044, %v3001
        %3072 = vst.msk [vmem:[#allocation2 + $0x6c] sm:$0xf] %vm3044, %v3003
        %3073 = vst.msk [vmem:[#allocation2 + $0x70] sm:$0xf] %vm3044, %v3005
        %3074 = vst.msk [vmem:[#allocation2 + $0x74] sm:$0xf] %vm3044, %v3007
        %3075 = vst.msk [vmem:[#allocation2 + $0x78] sm:$0xf] %vm3044, %v3009
        %3076 = vst.msk [vmem:[#allocation2 + $0x7c] sm:$0xf] %vm3044, %v3011
        %v3077 = vld [vmem:[#allocation2] sm:$0xf]
        %v3078 = vld [vmem:[#allocation2 + $0x4] sm:$0xf]
        %v3079 = vld [vmem:[#allocation2 + $0x8] sm:$0xf]
        %v3080 = vld [vmem:[#allocation2 + $0xc] sm:$0xf]
        %v3081 = vld [vmem:[#allocation2 + $0x10] sm:$0xf]
        %v3082 = vld [vmem:[#allocation2 + $0x14] sm:$0xf]
        %v3083 = vld [vmem:[#allocation2 + $0x18] sm:$0xf]
        %v3084 = vld [vmem:[#allocation2 + $0x1c] sm:$0xf]
        %v3085 = vld [vmem:[#allocation2 + $0x20] sm:$0xf]
        %v3086 = vld [vmem:[#allocation2 + $0x24] sm:$0xf]
        %v3087 = vld [vmem:[#allocation2 + $0x28] sm:$0xf]
        %v3088 = vld [vmem:[#allocation2 + $0x2c] sm:$0xf]
        %v3089 = vld [vmem:[#allocation2 + $0x30] sm:$0xf]
        %v3090 = vld [vmem:[#allocation2 + $0x34] sm:$0xf]
        %v3091 = vld [vmem:[#allocation2 + $0x38] sm:$0xf]
        %v3092 = vld [vmem:[#allocation2 + $0x3c] sm:$0xf]
        %v3093 = vld [vmem:[#allocation2 + $0x40] sm:$0xf]
        %v3094 = vld [vmem:[#allocation2 + $0x44] sm:$0xf]
        %v3095 = vld [vmem:[#allocation2 + $0x48] sm:$0xf]
        %v3096 = vld [vmem:[#allocation2 + $0x4c] sm:$0xf]
        %v3097 = vld [vmem:[#allocation2 + $0x50] sm:$0xf]
        %v3098 = vld [vmem:[#allocation2 + $0x54] sm:$0xf]
        %v3099 = vld [vmem:[#allocation2 + $0x58] sm:$0xf]
        %v3100 = vld [vmem:[#allocation2 + $0x5c] sm:$0xf]
        %v3101 = vld [vmem:[#allocation2 + $0x60] sm:$0xf]
        %v3102 = vld [vmem:[#allocation2 + $0x64] sm:$0xf]
        %v3103 = vld [vmem:[#allocation2 + $0x68] sm:$0xf]
        %v3104 = vld [vmem:[#allocation2 + $0x6c] sm:$0xf]
        %v3105 = vld [vmem:[#allocation2 + $0x70] sm:$0xf]
        %v3106 = vld [vmem:[#allocation2 + $0x74] sm:$0xf]
        %v3107 = vld [vmem:[#allocation2 + $0x78] sm:$0xf]
        %v3108 = vld [vmem:[#allocation2 + $0x7c] sm:$0xf]
        %v3109 = vld [vmem:[%s1] sm:$0xf]
        %v3110 = vld [vmem:[%s1 + $0x4] sm:$0xf]
        %v3111 = vld [vmem:[%s1 + $0x8] sm:$0xf]
        %v3112 = vld [vmem:[%s1 + $0xc] sm:$0xf]
        %v3113 = vld [vmem:[%s1 + $0x10] sm:$0xf]
        %v3114 = vld [vmem:[%s1 + $0x14] sm:$0xf]
        %v3115 = vld [vmem:[%s1 + $0x18] sm:$0xf]
        %v3116 = vld [vmem:[%s1 + $0x1c] sm:$0xf]
        %v3117 = vld [vmem:[%s1 + $0x20] sm:$0xf]
        %v3118 = vld [vmem:[%s1 + $0x24] sm:$0xf]
        %v3119 = vld [vmem:[%s1 + $0x28] sm:$0xf]
        %v3120 = vld [vmem:[%s1 + $0x2c] sm:$0xf]
        %v3121 = vld [vmem:[%s1 + $0x30] sm:$0xf]
        %v3122 = vld [vmem:[%s1 + $0x34] sm:$0xf]
        %v3123 = vld [vmem:[%s1 + $0x38] sm:$0xf]
        %v3124 = vld [vmem:[%s1 + $0x3c] sm:$0xf]
        %v3125 = vld [vmem:[%s2] sm:$0x1]
        %v3127 = vperm.slane %v3125, 0
        %v3161 = vunpack.c.l.b16 %v3077
        %v3162 = vunpack.c.l.b16 %v3078
        %v3163 = vunpack.c.l.b16 %v3079
        %v3164 = vunpack.c.l.b16 %v3080
        %v3165 = vunpack.c.l.b16 %v3081
        %v3166 = vunpack.c.l.b16 %v3082
        %v3167 = vunpack.c.l.b16 %v3083
        %v3168 = vunpack.c.l.b16 %v3084
        %v3169 = vunpack.c.l.b16 %v3085
        %v3170 = vunpack.c.l.b16 %v3086
        %v3171 = vunpack.c.l.b16 %v3087
        %v3172 = vunpack.c.l.b16 %v3088
        %v3173 = vunpack.c.l.b16 %v3089
        %v3174 = vunpack.c.l.b16 %v3090
        %v3175 = vunpack.c.l.b16 %v3091
        %v3176 = vunpack.c.l.b16 %v3092
        %v3177 = vunpack.c.l.b16 %v3093
        %v3178 = vunpack.c.l.b16 %v3094
        %v3179 = vunpack.c.l.b16 %v3095
        %v3180 = vunpack.c.l.b16 %v3096
        %v3181 = vunpack.c.l.b16 %v3097
        %v3182 = vunpack.c.l.b16 %v3098
        %v3183 = vunpack.c.l.b16 %v3099
        %v3184 = vunpack.c.l.b16 %v3100
        %v3185 = vunpack.c.l.b16 %v3101
        %v3186 = vunpack.c.l.b16 %v3102
        %v3187 = vunpack.c.l.b16 %v3103
        %v3188 = vunpack.c.l.b16 %v3104
        %v3189 = vunpack.c.l.b16 %v3105
        %v3190 = vunpack.c.l.b16 %v3106
        %v3191 = vunpack.c.l.b16 %v3107
        %v3192 = vunpack.c.l.b16 %v3108
        %v3193 = vpack.c.b16 %v3162, %v3161
        %v3194 = vpack.c.b16 %v3164, %v3163
        %v3195 = vpack.c.b16 %v3166, %v3165
        %v3196 = vpack.c.b16 %v3168, %v3167
        %v3197 = vpack.c.b16 %v3170, %v3169
        %v3198 = vpack.c.b16 %v3172, %v3171
        %v3199 = vpack.c.b16 %v3174, %v3173
        %v3200 = vpack.c.b16 %v3176, %v3175
        %v3201 = vpack.c.b16 %v3178, %v3177
        %v3202 = vpack.c.b16 %v3180, %v3179
        %v3203 = vpack.c.b16 %v3182, %v3181
        %v3204 = vpack.c.b16 %v3184, %v3183
        %v3205 = vpack.c.b16 %v3186, %v3185
        %v3206 = vpack.c.b16 %v3188, %v3187
        %v3207 = vpack.c.b16 %v3190, %v3189
        %v3208 = vpack.c.b16 %v3192, %v3191
        %v3241 = vunpack.c.l.b16 %v3109
        %v3242 = vunpack.c.l.b16 %v3110
        %v3243 = vunpack.c.l.b16 %v3111
        %v3244 = vunpack.c.l.b16 %v3112
        %v3245 = vunpack.c.l.b16 %v3113
        %v3246 = vunpack.c.l.b16 %v3114
        %v3247 = vunpack.c.l.b16 %v3115
        %v3248 = vunpack.c.l.b16 %v3116
        %v3249 = vunpack.c.l.b16 %v3117
        %v3250 = vunpack.c.l.b16 %v3118
        %v3251 = vunpack.c.l.b16 %v3119
        %v3252 = vunpack.c.l.b16 %v3120
        %v3253 = vunpack.c.l.b16 %v3121
        %v3254 = vunpack.c.l.b16 %v3122
        %v3255 = vunpack.c.l.b16 %v3123
        %v3256 = vunpack.c.l.b16 %v3124
        %v3257 = vpack.c.b16 %v3242, %v3241
        %v3258 = vpack.c.b16 %v3244, %v3243
        %v3259 = vpack.c.b16 %v3246, %v3245
        %v3260 = vpack.c.b16 %v3248, %v3247
        %v3261 = vpack.c.b16 %v3250, %v3249
        %v3262 = vpack.c.b16 %v3252, %v3251
        %v3263 = vpack.c.b16 %v3254, %v3253
        %v3264 = vpack.c.b16 %v3256, %v3255
        %3273 = vmatpush.bf16.msra.mxu0 %v3264
        %3274 = vmatpush.bf16.msra.mxu0 %v3263
        %3275 = vmatpush.bf16.msra.mxu0 %v3262
        %3276 = vmatpush.bf16.msra.mxu0 %v3261
        %3277 = vmatpush.bf16.msra.mxu0 %v3260
        %3278 = vmatpush.bf16.msra.mxu0 %v3259
        %3279 = vmatpush.bf16.msra.mxu0 %v3258
        %3280 = vmatpush.bf16.msra.mxu0 %v3257
        %3281 = vmatmul.bf16.gmra.mxu0 %v3193
        %v3282 = vpop.f32.mrf.mxu0
        %v3283 = vadd.f32 %v3127, %v3282
        %v3284 = vpop.f32.mrf.mxu0
        %v3285 = vadd.f32 %v3127, %v3284
        %3286 = vmatmul.bf16.gmra.mxu0 %v3194
        %v3287 = vpop.f32.mrf.mxu0
        %v3288 = vadd.f32 %v3127, %v3287
        %v3289 = vpop.f32.mrf.mxu0
        %v3290 = vadd.f32 %v3127, %v3289
        %3291 = vmatmul.bf16.gmra.mxu0 %v3195
        %v3292 = vpop.f32.mrf.mxu0
        %v3293 = vadd.f32 %v3127, %v3292
        %v3294 = vpop.f32.mrf.mxu0
        %v3295 = vadd.f32 %v3127, %v3294
        %3296 = vmatmul.bf16.gmra.mxu0 %v3196
        %v3297 = vpop.f32.mrf.mxu0
        %v3298 = vadd.f32 %v3127, %v3297
        %v3299 = vpop.f32.mrf.mxu0
        %v3300 = vadd.f32 %v3127, %v3299
        %3301 = vmatmul.bf16.gmra.mxu0 %v3197
        %v3302 = vpop.f32.mrf.mxu0
        %v3303 = vadd.f32 %v3127, %v3302
        %v3304 = vpop.f32.mrf.mxu0
        %v3305 = vadd.f32 %v3127, %v3304
        %3306 = vmatmul.bf16.gmra.mxu0 %v3198
        %v3307 = vpop.f32.mrf.mxu0
        %v3308 = vadd.f32 %v3127, %v3307
        %v3309 = vpop.f32.mrf.mxu0
        %v3310 = vadd.f32 %v3127, %v3309
        %3311 = vmatmul.bf16.gmra.mxu0 %v3199
        %v3312 = vpop.f32.mrf.mxu0
        %v3313 = vadd.f32 %v3127, %v3312
        %v3314 = vpop.f32.mrf.mxu0
        %v3315 = vadd.f32 %v3127, %v3314
        %3316 = vmatmul.bf16.gmra.mxu0 %v3200
        %v3317 = vpop.f32.mrf.mxu0
        %v3318 = vadd.f32 %v3127, %v3317
        %v3319 = vpop.f32.mrf.mxu0
        %v3320 = vadd.f32 %v3127, %v3319
        %3321 = vmatmul.bf16.gmra.mxu0 %v3201
        %v3322 = vpop.f32.mrf.mxu0
        %v3323 = vadd.f32 %v3127, %v3322
        %v3324 = vpop.f32.mrf.mxu0
        %v3325 = vadd.f32 %v3127, %v3324
        %3326 = vmatmul.bf16.gmra.mxu0 %v3202
        %v3327 = vpop.f32.mrf.mxu0
        %v3328 = vadd.f32 %v3127, %v3327
        %v3329 = vpop.f32.mrf.mxu0
        %v3330 = vadd.f32 %v3127, %v3329
        %3331 = vmatmul.bf16.gmra.mxu0 %v3203
        %v3332 = vpop.f32.mrf.mxu0
        %v3333 = vadd.f32 %v3127, %v3332
        %v3334 = vpop.f32.mrf.mxu0
        %v3335 = vadd.f32 %v3127, %v3334
        %3336 = vmatmul.bf16.gmra.mxu0 %v3204
        %v3337 = vpop.f32.mrf.mxu0
        %v3338 = vadd.f32 %v3127, %v3337
        %v3339 = vpop.f32.mrf.mxu0
        %v3340 = vadd.f32 %v3127, %v3339
        %3341 = vmatmul.bf16.gmra.mxu0 %v3205
        %v3342 = vpop.f32.mrf.mxu0
        %v3343 = vadd.f32 %v3127, %v3342
        %v3344 = vpop.f32.mrf.mxu0
        %v3345 = vadd.f32 %v3127, %v3344
        %3346 = vmatmul.bf16.gmra.mxu0 %v3206
        %v3347 = vpop.f32.mrf.mxu0
        %v3348 = vadd.f32 %v3127, %v3347
        %v3349 = vpop.f32.mrf.mxu0
        %v3350 = vadd.f32 %v3127, %v3349
        %3351 = vmatmul.bf16.gmra.mxu0 %v3207
        %v3352 = vpop.f32.mrf.mxu0
        %v3353 = vadd.f32 %v3127, %v3352
        %v3354 = vpop.f32.mrf.mxu0
        %v3355 = vadd.f32 %v3127, %v3354
        %3356 = vmatmul.bf16.gmra.mxu0 %v3208
        %v3357 = vpop.f32.mrf.mxu0
        %v3358 = vadd.f32 %v3127, %v3357
        %v3359 = vpop.f32.mrf.mxu0
        %v3360 = vadd.f32 %v3127, %v3359
        %3361 = vdwg.mxu0
        %3362 = vst [vmem:[%s177] sm:$0xff] %v3283
        %3363 = vst [vmem:[%s177 + $0x8] sm:$0xff] %v3285
        %3364 = vst [vmem:[%s177 + $0x10] sm:$0xff] %v3288
        %3365 = vst [vmem:[%s177 + $0x18] sm:$0xff] %v3290
        %3366 = vst [vmem:[%s177 + $0x20] sm:$0xff] %v3293
        %3367 = vst [vmem:[%s177 + $0x28] sm:$0xff] %v3295
        %3368 = vst [vmem:[%s177 + $0x30] sm:$0xff] %v3298
        %3369 = vst [vmem:[%s177 + $0x38] sm:$0xff] %v3300
        %3370 = vst [vmem:[%s177 + $0x40] sm:$0xff] %v3303
        %3371 = vst [vmem:[%s177 + $0x48] sm:$0xff] %v3305
        %3372 = vst [vmem:[%s177 + $0x50] sm:$0xff] %v3308
        %3373 = vst [vmem:[%s177 + $0x58] sm:$0xff] %v3310
        %3374 = vst [vmem:[%s177 + $0x60] sm:$0xff] %v3313
        %3375 = vst [vmem:[%s177 + $0x68] sm:$0xff] %v3315
        %3376 = vst [vmem:[%s177 + $0x70] sm:$0xff] %v3318
        %3377 = vst [vmem:[%s177 + $0x78] sm:$0xff] %v3320
        %3378 = vst [vmem:[%s177 + $0x80] sm:$0xff] %v3323
        %3379 = vst [vmem:[%s177 + $0x88] sm:$0xff] %v3325
        %3380 = vst [vmem:[%s177 + $0x90] sm:$0xff] %v3328
        %3381 = vst [vmem:[%s177 + $0x98] sm:$0xff] %v3330
        %3382 = vst [vmem:[%s177 + $0xa0] sm:$0xff] %v3333
        %3383 = vst [vmem:[%s177 + $0xa8] sm:$0xff] %v3335
        %3384 = vst [vmem:[%s177 + $0xb0] sm:$0xff] %v3338
        %3385 = vst [vmem:[%s177 + $0xb8] sm:$0xff] %v3340
        %3386 = vst [vmem:[%s177 + $0xc0] sm:$0xff] %v3343
        %3387 = vst [vmem:[%s177 + $0xc8] sm:$0xff] %v3345
        %3388 = vst [vmem:[%s177 + $0xd0] sm:$0xff] %v3348
        %3389 = vst [vmem:[%s177 + $0xd8] sm:$0xff] %v3350
        %3390 = vst [vmem:[%s177 + $0xe0] sm:$0xff] %v3353
        %3391 = vst [vmem:[%s177 + $0xe8] sm:$0xff] %v3355
        %3392 = vst [vmem:[%s177 + $0xf0] sm:$0xff] %v3358
        %3393 = vst [vmem:[%s177 + $0xf8] sm:$0xff] %v3360
        %s3394 = sand.u32 %s107, 1
        %s3395 = scalar_lea.sflag [#allocation4], %s3394
        %s3396 = sand.u32 %s107, 1
        %s3397 = smul.addr %s3396, 256
        %s3398 = scalar_lea.vmem [#allocation3], %s3397
        // Predicated region
        $region33: #{tpu_custom_call.1} parent=31 // pred_check
          %p3399 = pneg %p117
        $region34: #{tpu_custom_call.1} parent=31 // pred_check_branch
          %3401 = sbr.rel (%p3399) target = $region36
        $region35: #{tpu_custom_call.1} parent=31 // pred_region
          %s3402 = smul.u32 16, %s22
          %3404 = vsyncadd %s3395, 0
          %s3405 = smul.addr %s3402, 2
          %s3406 = smul.addr %s21, 32
          %s3407 = sadd.s32 %s3405, %s3406
          %s3408 = smul.addr %s3407, 8
          %s3409 = scalar_lea.hbm %s3, %s3408
          %s3410 = sshll.u32 %s3398, 4
          %s3411 = int_to_ptr.vmem [resolvable:$true] %s3410
          %s3412 = sshll.u32 %s3409, 4
          %s3413 = int_to_ptr.hbm [resolvable:$true] %s3412
          %3418 = dma.vmem_to_hbm [thread:$0]  %s3411, 4096, %s3413, %s3395, 128, 128, 8
        $region36: #{tpu_custom_call.1} parent=31 // pred_fallthru
          _
      $region32: #{tpu_custom_call.1} parent=5 // pred_fallthru
        _
      %p3419 = scmp.le.s32.totalorder 2, %s12
      // Predicated region
      $region37: #{tpu_custom_call.1} parent=5 // pred_check
        %p3420 = pneg %p3419
      $region38: #{tpu_custom_call.1} parent=5 // pred_check_branch
        %3422 = sbr.rel (%p3420) target = $region40
      $region39: #{tpu_custom_call.1} parent=5 // pred_region
        %s3423 = ssub.s32 %s12, 2
        // Predicated region
        $region41: #{tpu_custom_call.1} parent=39 // pred_check
          %p3424 = pneg %p123
        $region42: #{tpu_custom_call.1} parent=39 // pred_check_branch
          %3426 = sbr.rel (%p3424) target = $region44
        $region43: #{tpu_custom_call.1} parent=39 // pred_region
          %s3427 = sand.u32 %s108, 1
          %s3428 = scalar_lea.sflag [#allocation4], %s3427
          %s3429 = sand.u32 %s108, 1
          %s3430 = smul.addr %s3429, 256
          %s3431 = scalar_lea.vmem [#allocation3], %s3430
          %3433 = dma.done %s3428, 4096
        $region44: #{tpu_custom_call.1} parent=39 // pred_fallthru
          _
      $region40: #{tpu_custom_call.1} parent=5 // pred_fallthru
        _
    $region6: #{tpu_custom_call.1} parent=1 // loop_footer
      %s16 = sadd.s32 1, %s12
    $region7: #{tpu_custom_call.1} parent=1 // loop_footer_branch
      %11 = sbr.rel target = $region3
    $region8: #{tpu_custom_call.1} parent=1 // loop_exit
      _
    %3434 = vsyncpa [#allocation4], 1
    %s3435 = scalar_lea.sflag [#allocation4], 1
    %3436 = vsyncpa %s3435, 1

</llo_original>
